<compile_context>
chip_gen: v7x
topology: tpu7x:2x2x1
jax: 0.10.0
libtpu: 0.0.40
codegen_flags: <defaults>
</compile_context>

<pallas_src>
import jax
import jax.numpy as jnp
from jax.experimental import pallas as pl
from jax.experimental.pallas import tpu as pltpu


# --------------------------------------------------------------------------
# Kernel
# --------------------------------------------------------------------------
def dfm_kernel(f1_ref, f2_ref, u_ref,
               w1_ref, b1_ref, w2_ref, b2_ref,
               wf1a_ref, wf1b_ref, bf1_ref,
               wf2_ref, bf2_ref,
               o_ref):
    # f1_ref : (1, HW,  C1)   low-res feature1, channel-last
    # f2_ref : (1, HW2, C2)   full-res feature2, channel-last
    # u_ref  : (HW2, HW)      bilinear x2 upsample operator (rows sum to 1)
    # w*_ref : pre-transposed 1x1-conv weights (Cin, Cout); b*_ref: (1, Cout)
    # o_ref  : (1, HW2, Cout)
    f1 = f1_ref[0]                                             # (HW,  C1)
    f2 = f2_ref[0]                                             # (HW2, C2)

    # adjust_channel1 at LOW resolution (1x1 conv + bias commute with the
    # row-stochastic upsample operator), then upsample with one MXU matmul.
    p1 = jnp.dot(f1, w1_ref[...],
                 preferred_element_type=jnp.float32) + b1_ref[...]          # (HW, Cout)
    f1a = jnp.dot(u_ref[...], p1,
                  preferred_element_type=jnp.float32)                       # (HW2, Cout)

    # adjust_channel2.
    f2a = jnp.dot(f2, w2_ref[...],
                  preferred_element_type=jnp.float32) + b2_ref[...]         # (HW2, Cout)

    # fusion_network first conv on cat(f1a, f2a), split so no concat is built.
    h = (jnp.dot(f1a, wf1a_ref[...], preferred_element_type=jnp.float32)
         + jnp.dot(f2a, wf1b_ref[...], preferred_element_type=jnp.float32)
         + bf1_ref[...])
    h = jnp.maximum(h, 0.0)                                                  # (HW2, Cout)

    # AdaptiveAvgPool2d(1): sublane reduce over all pixels, constant scale.
    pooled = jnp.sum(h, axis=0, keepdims=True) * (1.0 / h.shape[0])          # (1, Cout)

    # Second 1x1 conv + sigmoid -> per-channel fusion gate (row vector).
    g = jax.nn.sigmoid(
        jnp.dot(pooled, wf2_ref[...], preferred_element_type=jnp.float32)
        + bf2_ref[...])                                                      # (1, Cout)

    # fused = g*f1a + (1-g)*f2a  ==  f2a + g*(f1a - f2a)   (one fewer vmul).
    o_ref[0] = (f2a + g * (f1a - f2a)).astype(o_ref.dtype)


# --------------------------------------------------------------------------
# Wrapper
# --------------------------------------------------------------------------
def make_bilinear_matrix(in_size, out_size):
    """1-D bilinear interpolation operator matching PyTorch F.interpolate
    (mode='bilinear', align_corners=False)."""
    scale = in_size / out_size
    dst = jnp.arange(out_size, dtype=jnp.float32)
    src = (dst + 0.5) * scale - 0.5
    src = jnp.maximum(src, 0.0)                      # PyTorch clamps negatives to 0
    i0 = jnp.minimum(jnp.floor(src).astype(jnp.int32), in_size - 1)
    i1 = jnp.minimum(i0 + 1, in_size - 1)
    lam = src - i0.astype(jnp.float32)
    rows = jnp.arange(out_size)
    m = jnp.zeros((out_size, in_size), dtype=jnp.float32)
    m = m.at[rows, i0].add(1.0 - lam)
    m = m.at[rows, i1].add(lam)
    return m


def dynamic_fusion_forward(feature1, feature2, params):
    """feature1: (B, C1, H, W); feature2: (B, C2, 2H, 2W); NCHW in/out."""
    B, C1, H, W = feature1.shape
    _, C2, H2, W2 = feature2.shape
    assert H2 == 2 * H and W2 == 2 * W
    Cout = params["w1"].shape[0]
    HW, HW2 = H * W, H2 * W2

    # Layout plumbing (wrapper-side, not in-kernel): channel-last, flattened
    # spatial so channels land on lanes.
    f1_flat = jnp.transpose(feature1, (0, 2, 3, 1)).reshape(B, HW, C1)
    f2_flat = jnp.transpose(feature2, (0, 2, 3, 1)).reshape(B, HW2, C2)

    # Bilinear x2 upsample operator on the flattened (H*W) spatial index.
    uh = make_bilinear_matrix(H, H2)                 # (2H, H)
    uw = make_bilinear_matrix(W, W2)                 # (2W, W)
    u = jnp.kron(uh, uw)                             # (HW2, HW)

    # Pre-transpose all 1x1-conv weights so the kernel never transposes.
    w1t = params["w1"].T                             # (C1, Cout)
    w2t = params["w2"].T                             # (C2, Cout)
    wf1t = params["wf1"].T                           # (2*Cout, Cout)
    wf1a_t = wf1t[:Cout]                             # acts on f1a channels
    wf1b_t = wf1t[Cout:]                             # acts on f2a channels
    wf2t = params["wf2"].T                           # (Cout, Cout)
    b1 = params["b1"][None, :]
    b2 = params["b2"][None, :]
    bf1 = params["bf1"][None, :]
    bf2 = params["bf2"][None, :]

    out_flat = pl.pallas_call(
        dfm_kernel,
        out_shape=jax.ShapeDtypeStruct((B, HW2, Cout), feature1.dtype),
        grid_spec=pltpu.PrefetchScalarGridSpec(
            num_scalar_prefetch=0,
            grid=(B,),
            in_specs=[
                pl.BlockSpec((1, HW, C1), lambda b: (b, 0, 0)),
                pl.BlockSpec((1, HW2, C2), lambda b: (b, 0, 0)),
                pl.BlockSpec(u.shape, lambda b: (0, 0)),
                pl.BlockSpec(w1t.shape, lambda b: (0, 0)),
                pl.BlockSpec(b1.shape, lambda b: (0, 0)),
                pl.BlockSpec(w2t.shape, lambda b: (0, 0)),
                pl.BlockSpec(b2.shape, lambda b: (0, 0)),
                pl.BlockSpec(wf1a_t.shape, lambda b: (0, 0)),
                pl.BlockSpec(wf1b_t.shape, lambda b: (0, 0)),
                pl.BlockSpec(bf1.shape, lambda b: (0, 0)),
                pl.BlockSpec(wf2t.shape, lambda b: (0, 0)),
                pl.BlockSpec(bf2.shape, lambda b: (0, 0)),
            ],
            out_specs=pl.BlockSpec((1, HW2, Cout), lambda b: (b, 0, 0)),
        ),
        compiler_params=pltpu.CompilerParams(
            dimension_semantics=("parallel",),
            # Conservative explicit budget: fits v7x's smaller scoped VMEM too.
            vmem_limit_bytes=32 * 1024 * 1024,
        ),
    )(f1_flat, f2_flat, u, w1t, b1, w2t, b2, wf1a_t, wf1b_t, bf1, wf2t, bf2)

    return out_flat.reshape(B, H2, W2, Cout).transpose(0, 3, 1, 2)


# --------------------------------------------------------------------------
# Pure-JAX reference mirroring the PyTorch module (upsample -> conv order).
# --------------------------------------------------------------------------
def dynamic_fusion_reference(feature1, feature2, params):
    B, C1, H, W = feature1.shape
    uh = make_bilinear_matrix(H, 2 * H)
    uw = make_bilinear_matrix(W, 2 * W)
    f1_up = jnp.einsum("hH,bcHW,wW->bchw", uh, feature1, uw)
    f1a = (jnp.einsum("oc,bchw->bohw", params["w1"], f1_up)
           + params["b1"][None, :, None, None])
    f2a = (jnp.einsum("oc,bchw->bohw", params["w2"], feature2)
           + params["b2"][None, :, None, None])
    comb = jnp.concatenate([f1a, f2a], axis=1)
    h = (jnp.einsum("oc,bchw->bohw", params["wf1"], comb)
         + params["bf1"][None, :, None, None])
    h = jnp.maximum(h, 0.0)
    pooled = jnp.mean(h, axis=(2, 3))                              # (B, Cout)
    g = jax.nn.sigmoid(pooled @ params["wf2"].T + params["bf2"])   # (B, Cout)
    g = g[:, :, None, None]
    return g * f1a + (1.0 - g) * f2a


if __name__ == "__main__":
    B = 2
    C1, C2, Cout = 4, 8, 32          # channel1, channel2, out_channels
    H1, W1 = 8, 8                    # feature1 spatial (upsampled x2)
    H2s, W2s = 2 * H1, 2 * W1        # feature2 spatial must match upsampled f1

    key = jax.random.PRNGKey(0)
    ks = jax.random.split(key, 10)
    feature1 = jax.random.normal(ks[0], (B, C1, H1, W1), jnp.float32)
    feature2 = jax.random.normal(ks[1], (B, C2, H2s, W2s), jnp.float32)
    params = dict(
        w1=jax.random.normal(ks[2], (Cout, C1), jnp.float32) * 0.1,
        b1=jax.random.normal(ks[3], (Cout,), jnp.float32) * 0.1,
        w2=jax.random.normal(ks[4], (Cout, C2), jnp.float32) * 0.1,
        b2=jax.random.normal(ks[5], (Cout,), jnp.float32) * 0.1,
        wf1=jax.random.normal(ks[6], (Cout, 2 * Cout), jnp.float32) * 0.1,
        bf1=jax.random.normal(ks[7], (Cout,), jnp.float32) * 0.1,
        wf2=jax.random.normal(ks[8], (Cout, Cout), jnp.float32) * 0.1,
        bf2=jax.random.normal(ks[9], (Cout,), jnp.float32) * 0.1,
    )

    out = dynamic_fusion_forward(feature1, feature2, params)
    out = jax.block_until_ready(out)

    ref = dynamic_fusion_reference(feature1, feature2, params)
    assert out.shape == (B, Cout, H2s, W2s)
    assert jnp.allclose(out, ref, atol=1e-4, rtol=1e-4), "mismatch vs reference"

    print("KERNEL_OK")
</pallas_src>

<mosaic_0001>
module attributes {stable_mosaic.version = 11 : i64} {
  func.func @dfm_kernel(%arg0: i32, %arg1: memref<1x64x4xf32, #tpu.memory_space<vmem>>, %arg2: memref<1x256x8xf32, #tpu.memory_space<vmem>>, %arg3: memref<256x64xf32, #tpu.memory_space<vmem>>, %arg4: memref<4x32xf32, #tpu.memory_space<vmem>>, %arg5: memref<1x32xf32, #tpu.memory_space<vmem>>, %arg6: memref<8x32xf32, #tpu.memory_space<vmem>>, %arg7: memref<1x32xf32, #tpu.memory_space<vmem>>, %arg8: memref<32x32xf32, #tpu.memory_space<vmem>>, %arg9: memref<32x32xf32, #tpu.memory_space<vmem>>, %arg10: memref<1x32xf32, #tpu.memory_space<vmem>>, %arg11: memref<32x32xf32, #tpu.memory_space<vmem>>, %arg12: memref<1x32xf32, #tpu.memory_space<vmem>>, %arg13: memref<1x256x32xf32, #tpu.memory_space<vmem>>) attributes {dimension_semantics = [#tpu.dimension_semantics<parallel>], iteration_bounds = array<i64: 2>, scalar_prefetch = 0 : i64, scratch_operands = 0 : i64, tpu.core_type = #tpu.core_type<tc>, window_params = [{transform_indices = @transform_0, window_bounds = array<i64: 1, 64, 4>}, {transform_indices = @transform_1, window_bounds = array<i64: 1, 256, 8>}, {pipeline_mode = #tpu.pipeline_mode<synchronous>, transform_indices = @transform_2, window_bounds = array<i64: 256, 64>}, {pipeline_mode = #tpu.pipeline_mode<synchronous>, transform_indices = @transform_3, window_bounds = array<i64: 4, 32>}, {pipeline_mode = #tpu.pipeline_mode<synchronous>, transform_indices = @transform_4, window_bounds = array<i64: 1, 32>}, {pipeline_mode = #tpu.pipeline_mode<synchronous>, transform_indices = @transform_5, window_bounds = array<i64: 8, 32>}, {pipeline_mode = #tpu.pipeline_mode<synchronous>, transform_indices = @transform_6, window_bounds = array<i64: 1, 32>}, {pipeline_mode = #tpu.pipeline_mode<synchronous>, transform_indices = @transform_7, window_bounds = array<i64: 32, 32>}, {pipeline_mode = #tpu.pipeline_mode<synchronous>, transform_indices = @transform_8, window_bounds = array<i64: 32, 32>}, {pipeline_mode = #tpu.pipeline_mode<synchronous>, transform_indices = @transform_9, window_bounds = array<i64: 1, 32>}, {pipeline_mode = #tpu.pipeline_mode<synchronous>, transform_indices = @transform_10, window_bounds = array<i64: 32, 32>}, {pipeline_mode = #tpu.pipeline_mode<synchronous>, transform_indices = @transform_11, window_bounds = array<i64: 1, 32>}, {transform_indices = @transform_12, window_bounds = array<i64: 1, 256, 32>}]} {
    %c0 = arith.constant 0 : index
    %c0_0 = arith.constant 0 : index
    %c0_1 = arith.constant 0 : index
    %0 = vector.load %arg1[%c0, %c0_0, %c0_1] : memref<1x64x4xf32, #tpu.memory_space<vmem>>, vector<1x64x4xf32>
    %1 = vector.shape_cast %0 : vector<1x64x4xf32> to vector<64x4xf32>
    %c0_2 = arith.constant 0 : index
    %c0_3 = arith.constant 0 : index
    %c0_4 = arith.constant 0 : index
    %2 = vector.load %arg2[%c0_2, %c0_3, %c0_4] : memref<1x256x8xf32, #tpu.memory_space<vmem>>, vector<1x256x8xf32>
    %3 = vector.shape_cast %2 : vector<1x256x8xf32> to vector<256x8xf32>
    %c0_5 = arith.constant 0 : index
    %c0_6 = arith.constant 0 : index
    %4 = vector.load %arg4[%c0_5, %c0_6] : memref<4x32xf32, #tpu.memory_space<vmem>>, vector<4x32xf32>
    %cst = arith.constant dense<0.000000e+00> : vector<64x32xf32>
    %5 = tpu.matmul %1, %4, %cst {dimension_numbers = #tpu.dot_dimension_numbers<[1], [0], [0], [1], [0, 0, 1, 1], [], []>} : vector<64x4xf32>, vector<4x32xf32>, vector<64x32xf32> -> vector<64x32xf32>
    %c0_7 = arith.constant 0 : index
    %c0_8 = arith.constant 0 : index
    %6 = vector.load %arg5[%c0_7, %c0_8] : memref<1x32xf32, #tpu.memory_space<vmem>>, vector<1x32xf32>
    %7 = vector.broadcast %6 : vector<1x32xf32> to vector<64x32xf32>
    %8 = arith.addf %5, %7 : vector<64x32xf32>
    %c0_9 = arith.constant 0 : index
    %c0_10 = arith.constant 0 : index
    %9 = vector.load %arg3[%c0_9, %c0_10] : memref<256x64xf32, #tpu.memory_space<vmem>>, vector<256x64xf32>
    %cst_11 = arith.constant dense<0.000000e+00> : vector<256x32xf32>
    %10 = tpu.matmul %9, %8, %cst_11 {dimension_numbers = #tpu.dot_dimension_numbers<[1], [0], [0], [1], [0, 0, 1, 1], [], []>} : vector<256x64xf32>, vector<64x32xf32>, vector<256x32xf32> -> vector<256x32xf32>
    %c0_12 = arith.constant 0 : index
    %c0_13 = arith.constant 0 : index
    %11 = vector.load %arg6[%c0_12, %c0_13] : memref<8x32xf32, #tpu.memory_space<vmem>>, vector<8x32xf32>
    %cst_14 = arith.constant dense<0.000000e+00> : vector<256x32xf32>
    %12 = tpu.matmul %3, %11, %cst_14 {dimension_numbers = #tpu.dot_dimension_numbers<[1], [0], [0], [1], [0, 0, 1, 1], [], []>} : vector<256x8xf32>, vector<8x32xf32>, vector<256x32xf32> -> vector<256x32xf32>
    %c0_15 = arith.constant 0 : index
    %c0_16 = arith.constant 0 : index
    %13 = vector.load %arg7[%c0_15, %c0_16] : memref<1x32xf32, #tpu.memory_space<vmem>>, vector<1x32xf32>
    %14 = vector.broadcast %13 : vector<1x32xf32> to vector<256x32xf32>
    %15 = arith.addf %12, %14 : vector<256x32xf32>
    %c0_17 = arith.constant 0 : index
    %c0_18 = arith.constant 0 : index
    %16 = vector.load %arg8[%c0_17, %c0_18] : memref<32x32xf32, #tpu.memory_space<vmem>>, vector<32x32xf32>
    %cst_19 = arith.constant dense<0.000000e+00> : vector<256x32xf32>
    %17 = tpu.matmul %10, %16, %cst_19 {dimension_numbers = #tpu.dot_dimension_numbers<[1], [0], [0], [1], [0, 0, 1, 1], [], []>} : vector<256x32xf32>, vector<32x32xf32>, vector<256x32xf32> -> vector<256x32xf32>
    %c0_20 = arith.constant 0 : index
    %c0_21 = arith.constant 0 : index
    %18 = vector.load %arg9[%c0_20, %c0_21] : memref<32x32xf32, #tpu.memory_space<vmem>>, vector<32x32xf32>
    %cst_22 = arith.constant dense<0.000000e+00> : vector<256x32xf32>
    %19 = tpu.matmul %15, %18, %cst_22 {dimension_numbers = #tpu.dot_dimension_numbers<[1], [0], [0], [1], [0, 0, 1, 1], [], []>} : vector<256x32xf32>, vector<32x32xf32>, vector<256x32xf32> -> vector<256x32xf32>
    %20 = arith.addf %17, %19 : vector<256x32xf32>
    %c0_23 = arith.constant 0 : index
    %c0_24 = arith.constant 0 : index
    %21 = vector.load %arg10[%c0_23, %c0_24] : memref<1x32xf32, #tpu.memory_space<vmem>>, vector<1x32xf32>
    %22 = vector.broadcast %21 : vector<1x32xf32> to vector<256x32xf32>
    %23 = arith.addf %20, %22 : vector<256x32xf32>
    %cst_25 = arith.constant 0.000000e+00 : f32
    %24 = vector.broadcast %cst_25 : f32 to vector<256x32xf32>
    %25 = arith.maximumf %23, %24 : vector<256x32xf32>
    %cst_26 = arith.constant dense<0.000000e+00> : vector<32xf32>
    %26 = vector.multi_reduction <add>, %25, %cst_26 [0] : vector<256x32xf32> to vector<32xf32>
    %27 = vector.shape_cast %26 : vector<32xf32> to vector<1x32xf32>
    %cst_27 = arith.constant 3.906250e-03 : f32
    %28 = vector.broadcast %cst_27 : f32 to vector<1x32xf32>
    %29 = arith.mulf %27, %28 : vector<1x32xf32>
    %c0_28 = arith.constant 0 : index
    %c0_29 = arith.constant 0 : index
    %30 = vector.load %arg11[%c0_28, %c0_29] : memref<32x32xf32, #tpu.memory_space<vmem>>, vector<32x32xf32>
    %cst_30 = arith.constant dense<0.000000e+00> : vector<1x32xf32>
    %31 = tpu.matmul %29, %30, %cst_30 {dimension_numbers = #tpu.dot_dimension_numbers<[1], [0], [0], [1], [0, 0, 1, 1], [], []>} : vector<1x32xf32>, vector<32x32xf32>, vector<1x32xf32> -> vector<1x32xf32>
    %c0_31 = arith.constant 0 : index
    %c0_32 = arith.constant 0 : index
    %32 = vector.load %arg12[%c0_31, %c0_32] : memref<1x32xf32, #tpu.memory_space<vmem>>, vector<1x32xf32>
    %33 = arith.addf %31, %32 : vector<1x32xf32>
    %34 = arith.negf %33 : vector<1x32xf32>
    %35 = math.exp %34 : vector<1x32xf32>
    %cst_33 = arith.constant 1.000000e+00 : f32
    %36 = vector.broadcast %cst_33 : f32 to vector<1x32xf32>
    %37 = arith.addf %36, %35 : vector<1x32xf32>
    %38 = arith.divf %36, %37 : vector<1x32xf32>
    %39 = arith.subf %10, %15 : vector<256x32xf32>
    %40 = vector.broadcast %38 : vector<1x32xf32> to vector<256x32xf32>
    %41 = arith.mulf %40, %39 : vector<256x32xf32>
    %42 = arith.addf %15, %41 : vector<256x32xf32>
    %c0_34 = arith.constant 0 : index
    %c0_35 = arith.constant 0 : index
    %c0_36 = arith.constant 0 : index
    %43 = vector.load %arg13[%c0_34, %c0_35, %c0_36] : memref<1x256x32xf32, #tpu.memory_space<vmem>>, vector<1x256x32xf32>
    %44 = vector.shape_cast %43 : vector<1x256x32xf32> to vector<256x32xf32>
    %45 = vector.shape_cast %42 : vector<256x32xf32> to vector<1x256x32xf32>
    tpu.vector_store %arg13[%c0_34, %c0_35, %c0_36], %45 {strides = array<i32>} : memref<1x256x32xf32, #tpu.memory_space<vmem>>, vector<1x256x32xf32>,
    return
  }
  func.func @transform_0(%arg0: i32) -> (i32, i32, i32) {
    %c0_i32 = arith.constant 0 : i32
    %c0_i32_0 = arith.constant 0 : i32
    %c0_i32_1 = arith.constant 0 : i32
    return %arg0, %c0_i32, %c0_i32_0 : i32, i32, i32
  }
  func.func @transform_1(%arg0: i32) -> (i32, i32, i32) {
    %c0_i32 = arith.constant 0 : i32
    %c0_i32_0 = arith.constant 0 : i32
    %c0_i32_1 = arith.constant 0 : i32
    return %arg0, %c0_i32, %c0_i32_0 : i32, i32, i32
  }
  func.func @transform_2(%arg0: i32) -> (i32, i32) {
    %c0_i32 = arith.constant 0 : i32
    %c0_i32_0 = arith.constant 0 : i32
    %c0_i32_1 = arith.constant 0 : i32
    return %c0_i32, %c0_i32_0 : i32, i32
  }
  func.func @transform_3(%arg0: i32) -> (i32, i32) {
    %c0_i32 = arith.constant 0 : i32
    %c0_i32_0 = arith.constant 0 : i32
    %c0_i32_1 = arith.constant 0 : i32
    return %c0_i32, %c0_i32_0 : i32, i32
  }
  func.func @transform_4(%arg0: i32) -> (i32, i32) {
    %c0_i32 = arith.constant 0 : i32
    %c0_i32_0 = arith.constant 0 : i32
    %c0_i32_1 = arith.constant 0 : i32
    return %c0_i32, %c0_i32_0 : i32, i32
  }
  func.func @transform_5(%arg0: i32) -> (i32, i32) {
    %c0_i32 = arith.constant 0 : i32
    %c0_i32_0 = arith.constant 0 : i32
    %c0_i32_1 = arith.constant 0 : i32
    return %c0_i32, %c0_i32_0 : i32, i32
  }
  func.func @transform_6(%arg0: i32) -> (i32, i32) {
    %c0_i32 = arith.constant 0 : i32
    %c0_i32_0 = arith.constant 0 : i32
    %c0_i32_1 = arith.constant 0 : i32
    return %c0_i32, %c0_i32_0 : i32, i32
  }
  func.func @transform_7(%arg0: i32) -> (i32, i32) {
    %c0_i32 = arith.constant 0 : i32
    %c0_i32_0 = arith.constant 0 : i32
    %c0_i32_1 = arith.constant 0 : i32
    return %c0_i32, %c0_i32_0 : i32, i32
  }
  func.func @transform_8(%arg0: i32) -> (i32, i32) {
    %c0_i32 = arith.constant 0 : i32
    %c0_i32_0 = arith.constant 0 : i32
    %c0_i32_1 = arith.constant 0 : i32
    return %c0_i32, %c0_i32_0 : i32, i32
  }
  func.func @transform_9(%arg0: i32) -> (i32, i32) {
    %c0_i32 = arith.constant 0 : i32
    %c0_i32_0 = arith.constant 0 : i32
    %c0_i32_1 = arith.constant 0 : i32
    return %c0_i32, %c0_i32_0 : i32, i32
  }
  func.func @transform_10(%arg0: i32) -> (i32, i32) {
    %c0_i32 = arith.constant 0 : i32
    %c0_i32_0 = arith.constant 0 : i32
    %c0_i32_1 = arith.constant 0 : i32
    return %c0_i32, %c0_i32_0 : i32, i32
  }
  func.func @transform_11(%arg0: i32) -> (i32, i32) {
    %c0_i32 = arith.constant 0 : i32
    %c0_i32_0 = arith.constant 0 : i32
    %c0_i32_1 = arith.constant 0 : i32
    return %c0_i32, %c0_i32_0 : i32, i32
  }
  func.func @transform_12(%arg0: i32) -> (i32, i32, i32) {
    %c0_i32 = arith.constant 0 : i32
    %c0_i32_0 = arith.constant 0 : i32
    %c0_i32_1 = arith.constant 0 : i32
    return %arg0, %c0_i32, %c0_i32_0 : i32, i32, i32
  }
}

</mosaic_0001>

<llo_original>
// kernel: tpu_custom_call.1
$region0: #{tpu_custom_call.1}
  #allocation0 [shape = 'u32[]', space=smem, size = 0x4, offset = 0x4, fixed_abs, tag = 'smem constant byte address 0x4 - core index']
  #allocation1 [shape = 'u32[144,128]{1,0:T(1,128)}', space=vmem, size = 0x12000, scoped, tag = 'internal scratch']
  %s0 = inlined_call_operand.vmem [shape: f32[2,64,4], index: 0, kind: input, shape index: {}]
  %s1 = inlined_call_operand.vmem [shape: f32[2,256,8], index: 1, kind: input, shape index: {}]
  %s2 = inlined_call_operand.vmem [shape: f32[256,64], index: 2, kind: input, shape index: {}]
  %s3 = inlined_call_operand.vmem [shape: f32[4,32], index: 3, kind: input, shape index: {}]
  %s4 = inlined_call_operand.vmem [shape: f32[1,32], index: 4, kind: input, shape index: {}]
  %s5 = inlined_call_operand.vmem [shape: f32[8,32], index: 5, kind: input, shape index: {}]
  %s6 = inlined_call_operand.vmem [shape: f32[1,32], index: 6, kind: input, shape index: {}]
  %s7 = inlined_call_operand.vmem [shape: f32[32,32], index: 7, kind: input, shape index: {}]
  %s8 = inlined_call_operand.vmem [shape: f32[32,32], index: 8, kind: input, shape index: {}]
  %s9 = inlined_call_operand.vmem [shape: f32[1,32], index: 9, kind: input, shape index: {}]
  %s10 = inlined_call_operand.vmem [shape: f32[32,32], index: 10, kind: input, shape index: {}]
  %s11 = inlined_call_operand.vmem [shape: f32[1,32], index: 11, kind: input, shape index: {}]
  %s12 = inlined_call_operand.vmem [shape: f32[2,256,32], index: 12, kind: output, shape index: {}]
  %s13 = sld [smem:[#allocation0]]
  $region81: #{tpu_custom_call.1} parent=0
    _
  %s15 = ssub.s32 1, %s13
  %s16 = scalar_select 0, %s15, %s13
  loop: start=0, step=1, limit=4
  $region2: #{tpu_custom_call.1} parent=0 // loop_pre_header
    _
  $region3: #{tpu_custom_call.1} parent=0 // loop_header
    %s18 = sphi 0, %s22
    %p19 = scmp.ge.s32.totalorder %s18, 4
    %s28 = sphi 0, %s30
    %s31 = sphi 0, %s28
    %s32 = sphi 0, %s31
    %s48 = sphi 0, %s32
    %s54 = sphi 0, %s56
    %s57 = sphi 0, %s54
    %s58 = sphi 0, %s57
    %s74 = sphi 0, %s58
    %s78 = sphi 0, %s78
    %s80 = sphi 0, %s78
    %s81 = sphi 0, %s80
    %s95 = sphi 0, %s81
    %s99 = sphi 0, %s99
    %s101 = sphi 0, %s99
    %s102 = sphi 0, %s101
    %s116 = sphi 0, %s102
    %s120 = sphi 0, %s120
    %s122 = sphi 0, %s120
    %s123 = sphi 0, %s122
    %s137 = sphi 0, %s123
    %s141 = sphi 0, %s141
    %s143 = sphi 0, %s141
    %s144 = sphi 0, %s143
    %s158 = sphi 0, %s144
    %s162 = sphi 0, %s162
    %s164 = sphi 0, %s162
    %s165 = sphi 0, %s164
    %s179 = sphi 0, %s165
    %s183 = sphi 0, %s183
    %s185 = sphi 0, %s183
    %s186 = sphi 0, %s185
    %s200 = sphi 0, %s186
    %s204 = sphi 0, %s204
    %s206 = sphi 0, %s204
    %s207 = sphi 0, %s206
    %s221 = sphi 0, %s207
    %s225 = sphi 0, %s225
    %s227 = sphi 0, %s225
    %s228 = sphi 0, %s227
    %s242 = sphi 0, %s228
    %s246 = sphi 0, %s246
    %s248 = sphi 0, %s246
    %s249 = sphi 0, %s248
    %s263 = sphi 0, %s249
    %s267 = sphi 0, %s267
    %s269 = sphi 0, %s267
    %s270 = sphi 0, %s269
    %s284 = sphi 0, %s270
    %s290 = sphi 0, %s292
    %s293 = sphi 0, %s290
    %s294 = sphi 0, %s293
    %s310 = sphi 0, %s294
  $region4: #{tpu_custom_call.1} parent=0 // loop_header_branch
    %21 = sbr.rel (%p19) target = $region8
  $region5: #{tpu_custom_call.1} parent=0 // loop_body
    %s23 = ssub.s32 %s18, 1
    %s24 = ssub.s32 %s18, 2
    %s25 = sadd.s32 %s18, 1
    %s26 = ssub.s32 %s18, %s25
    %p27 = scmp.eq.s32.totalorder %s26, 0
    %s29 = sadd.s32 %s28, 1
    %s30 = scalar_select %p27, %s28, %s29
    %p33 = pneg %p27
    %p34 = scmp.eq.s32.totalorder %s18, 1
    %p35 = por %p33, %p34
    %p36 = scmp.ne.s32.totalorder %s28, %s31
    %p37 = scmp.eq.s32.totalorder %s18, 0
    %p38 = por %p36, %p37
    %p39 = scmp.ne.s32.totalorder %s28, %s31
    %p40 = scmp.eq.s32.totalorder %s23, 1
    %p41 = por %p39, %p40
    %p42 = scmp.ne.s32.totalorder %s31, %s32
    %p43 = scmp.eq.s32.totalorder %s23, 0
    %p44 = por %p42, %p43
    %p45 = scmp.ne.s32.totalorder %s31, %s32
    %p46 = scmp.eq.s32.totalorder %s24, 1
    %p47 = por %p45, %p46
    %p49 = scmp.ne.s32.totalorder %s32, %s48
    %p50 = scmp.eq.s32.totalorder %s24, 0
    %p51 = por %p49, %p50
    %s52 = ssub.s32 %s18, %s25
    %p53 = scmp.eq.s32.totalorder %s52, 0
    %s55 = sadd.s32 %s54, 1
    %s56 = scalar_select %p53, %s54, %s55
    %p59 = pneg %p53
    %p60 = scmp.eq.s32.totalorder %s18, 1
    %p61 = por %p59, %p60
    %p62 = scmp.ne.s32.totalorder %s54, %s57
    %p63 = scmp.eq.s32.totalorder %s18, 0
    %p64 = por %p62, %p63
    %p65 = scmp.ne.s32.totalorder %s54, %s57
    %p66 = scmp.eq.s32.totalorder %s23, 1
    %p67 = por %p65, %p66
    %p68 = scmp.ne.s32.totalorder %s57, %s58
    %p69 = scmp.eq.s32.totalorder %s23, 0
    %p70 = por %p68, %p69
    %p71 = scmp.ne.s32.totalorder %s57, %s58
    %p72 = scmp.eq.s32.totalorder %s24, 1
    %p73 = por %p71, %p72
    %p75 = scmp.ne.s32.totalorder %s58, %s74
    %p76 = scmp.eq.s32.totalorder %s24, 0
    %p77 = por %p75, %p76
    %s79 = sadd.s32 %s78, 1
    %p82 = scmp.eq.s32.totalorder %s18, 1
    %p83 = scmp.ne.s32.totalorder %s78, %s80
    %p84 = scmp.eq.s32.totalorder %s18, 0
    %p85 = por %p83, %p84
    %p86 = scmp.ne.s32.totalorder %s78, %s80
    %p87 = scmp.eq.s32.totalorder %s23, 1
    %p88 = por %p86, %p87
    %p89 = scmp.ne.s32.totalorder %s80, %s81
    %p90 = scmp.eq.s32.totalorder %s23, 0
    %p91 = por %p89, %p90
    %p92 = scmp.ne.s32.totalorder %s80, %s81
    %p93 = scmp.eq.s32.totalorder %s24, 1
    %p94 = por %p92, %p93
    %p96 = scmp.ne.s32.totalorder %s81, %s95
    %p97 = scmp.eq.s32.totalorder %s24, 0
    %p98 = por %p96, %p97
    %s100 = sadd.s32 %s99, 1
    %p103 = scmp.eq.s32.totalorder %s18, 1
    %p104 = scmp.ne.s32.totalorder %s99, %s101
    %p105 = scmp.eq.s32.totalorder %s18, 0
    %p106 = por %p104, %p105
    %p107 = scmp.ne.s32.totalorder %s99, %s101
    %p108 = scmp.eq.s32.totalorder %s23, 1
    %p109 = por %p107, %p108
    %p110 = scmp.ne.s32.totalorder %s101, %s102
    %p111 = scmp.eq.s32.totalorder %s23, 0
    %p112 = por %p110, %p111
    %p113 = scmp.ne.s32.totalorder %s101, %s102
    %p114 = scmp.eq.s32.totalorder %s24, 1
    %p115 = por %p113, %p114
    %p117 = scmp.ne.s32.totalorder %s102, %s116
    %p118 = scmp.eq.s32.totalorder %s24, 0
    %p119 = por %p117, %p118
    %s121 = sadd.s32 %s120, 1
    %p124 = scmp.eq.s32.totalorder %s18, 1
    %p125 = scmp.ne.s32.totalorder %s120, %s122
    %p126 = scmp.eq.s32.totalorder %s18, 0
    %p127 = por %p125, %p126
    %p128 = scmp.ne.s32.totalorder %s120, %s122
    %p129 = scmp.eq.s32.totalorder %s23, 1
    %p130 = por %p128, %p129
    %p131 = scmp.ne.s32.totalorder %s122, %s123
    %p132 = scmp.eq.s32.totalorder %s23, 0
    %p133 = por %p131, %p132
    %p134 = scmp.ne.s32.totalorder %s122, %s123
    %p135 = scmp.eq.s32.totalorder %s24, 1
    %p136 = por %p134, %p135
    %p138 = scmp.ne.s32.totalorder %s123, %s137
    %p139 = scmp.eq.s32.totalorder %s24, 0
    %p140 = por %p138, %p139
    %s142 = sadd.s32 %s141, 1
    %p145 = scmp.eq.s32.totalorder %s18, 1
    %p146 = scmp.ne.s32.totalorder %s141, %s143
    %p147 = scmp.eq.s32.totalorder %s18, 0
    %p148 = por %p146, %p147
    %p149 = scmp.ne.s32.totalorder %s141, %s143
    %p150 = scmp.eq.s32.totalorder %s23, 1
    %p151 = por %p149, %p150
    %p152 = scmp.ne.s32.totalorder %s143, %s144
    %p153 = scmp.eq.s32.totalorder %s23, 0
    %p154 = por %p152, %p153
    %p155 = scmp.ne.s32.totalorder %s143, %s144
    %p156 = scmp.eq.s32.totalorder %s24, 1
    %p157 = por %p155, %p156
    %p159 = scmp.ne.s32.totalorder %s144, %s158
    %p160 = scmp.eq.s32.totalorder %s24, 0
    %p161 = por %p159, %p160
    %s163 = sadd.s32 %s162, 1
    %p166 = scmp.eq.s32.totalorder %s18, 1
    %p167 = scmp.ne.s32.totalorder %s162, %s164
    %p168 = scmp.eq.s32.totalorder %s18, 0
    %p169 = por %p167, %p168
    %p170 = scmp.ne.s32.totalorder %s162, %s164
    %p171 = scmp.eq.s32.totalorder %s23, 1
    %p172 = por %p170, %p171
    %p173 = scmp.ne.s32.totalorder %s164, %s165
    %p174 = scmp.eq.s32.totalorder %s23, 0
    %p175 = por %p173, %p174
    %p176 = scmp.ne.s32.totalorder %s164, %s165
    %p177 = scmp.eq.s32.totalorder %s24, 1
    %p178 = por %p176, %p177
    %p180 = scmp.ne.s32.totalorder %s165, %s179
    %p181 = scmp.eq.s32.totalorder %s24, 0
    %p182 = por %p180, %p181
    %s184 = sadd.s32 %s183, 1
    %p187 = scmp.eq.s32.totalorder %s18, 1
    %p188 = scmp.ne.s32.totalorder %s183, %s185
    %p189 = scmp.eq.s32.totalorder %s18, 0
    %p190 = por %p188, %p189
    %p191 = scmp.ne.s32.totalorder %s183, %s185
    %p192 = scmp.eq.s32.totalorder %s23, 1
    %p193 = por %p191, %p192
    %p194 = scmp.ne.s32.totalorder %s185, %s186
    %p195 = scmp.eq.s32.totalorder %s23, 0
    %p196 = por %p194, %p195
    %p197 = scmp.ne.s32.totalorder %s185, %s186
    %p198 = scmp.eq.s32.totalorder %s24, 1
    %p199 = por %p197, %p198
    %p201 = scmp.ne.s32.totalorder %s186, %s200
    %p202 = scmp.eq.s32.totalorder %s24, 0
    %p203 = por %p201, %p202
    %s205 = sadd.s32 %s204, 1
    %p208 = scmp.eq.s32.totalorder %s18, 1
    %p209 = scmp.ne.s32.totalorder %s204, %s206
    %p210 = scmp.eq.s32.totalorder %s18, 0
    %p211 = por %p209, %p210
    %p212 = scmp.ne.s32.totalorder %s204, %s206
    %p213 = scmp.eq.s32.totalorder %s23, 1
    %p214 = por %p212, %p213
    %p215 = scmp.ne.s32.totalorder %s206, %s207
    %p216 = scmp.eq.s32.totalorder %s23, 0
    %p217 = por %p215, %p216
    %p218 = scmp.ne.s32.totalorder %s206, %s207
    %p219 = scmp.eq.s32.totalorder %s24, 1
    %p220 = por %p218, %p219
    %p222 = scmp.ne.s32.totalorder %s207, %s221
    %p223 = scmp.eq.s32.totalorder %s24, 0
    %p224 = por %p222, %p223
    %s226 = sadd.s32 %s225, 1
    %p229 = scmp.eq.s32.totalorder %s18, 1
    %p230 = scmp.ne.s32.totalorder %s225, %s227
    %p231 = scmp.eq.s32.totalorder %s18, 0
    %p232 = por %p230, %p231
    %p233 = scmp.ne.s32.totalorder %s225, %s227
    %p234 = scmp.eq.s32.totalorder %s23, 1
    %p235 = por %p233, %p234
    %p236 = scmp.ne.s32.totalorder %s227, %s228
    %p237 = scmp.eq.s32.totalorder %s23, 0
    %p238 = por %p236, %p237
    %p239 = scmp.ne.s32.totalorder %s227, %s228
    %p240 = scmp.eq.s32.totalorder %s24, 1
    %p241 = por %p239, %p240
    %p243 = scmp.ne.s32.totalorder %s228, %s242
    %p244 = scmp.eq.s32.totalorder %s24, 0
    %p245 = por %p243, %p244
    %s247 = sadd.s32 %s246, 1
    %p250 = scmp.eq.s32.totalorder %s18, 1
    %p251 = scmp.ne.s32.totalorder %s246, %s248
    %p252 = scmp.eq.s32.totalorder %s18, 0
    %p253 = por %p251, %p252
    %p254 = scmp.ne.s32.totalorder %s246, %s248
    %p255 = scmp.eq.s32.totalorder %s23, 1
    %p256 = por %p254, %p255
    %p257 = scmp.ne.s32.totalorder %s248, %s249
    %p258 = scmp.eq.s32.totalorder %s23, 0
    %p259 = por %p257, %p258
    %p260 = scmp.ne.s32.totalorder %s248, %s249
    %p261 = scmp.eq.s32.totalorder %s24, 1
    %p262 = por %p260, %p261
    %p264 = scmp.ne.s32.totalorder %s249, %s263
    %p265 = scmp.eq.s32.totalorder %s24, 0
    %p266 = por %p264, %p265
    %s268 = sadd.s32 %s267, 1
    %p271 = scmp.eq.s32.totalorder %s18, 1
    %p272 = scmp.ne.s32.totalorder %s267, %s269
    %p273 = scmp.eq.s32.totalorder %s18, 0
    %p274 = por %p272, %p273
    %p275 = scmp.ne.s32.totalorder %s267, %s269
    %p276 = scmp.eq.s32.totalorder %s23, 1
    %p277 = por %p275, %p276
    %p278 = scmp.ne.s32.totalorder %s269, %s270
    %p279 = scmp.eq.s32.totalorder %s23, 0
    %p280 = por %p278, %p279
    %p281 = scmp.ne.s32.totalorder %s269, %s270
    %p282 = scmp.eq.s32.totalorder %s24, 1
    %p283 = por %p281, %p282
    %p285 = scmp.ne.s32.totalorder %s270, %s284
    %p286 = scmp.eq.s32.totalorder %s24, 0
    %p287 = por %p285, %p286
    %s288 = ssub.s32 %s18, %s25
    %p289 = scmp.eq.s32.totalorder %s288, 0
    %s291 = sadd.s32 %s290, 1
    %s292 = scalar_select %p289, %s290, %s291
    %p295 = pneg %p289
    %p296 = scmp.eq.s32.totalorder %s18, 1
    %p297 = por %p295, %p296
    %p298 = scmp.ne.s32.totalorder %s290, %s293
    %p299 = scmp.eq.s32.totalorder %s18, 0
    %p300 = por %p298, %p299
    %p301 = scmp.ne.s32.totalorder %s290, %s293
    %p302 = scmp.eq.s32.totalorder %s23, 1
    %p303 = por %p301, %p302
    %p304 = scmp.ne.s32.totalorder %s293, %s294
    %p305 = scmp.eq.s32.totalorder %s23, 0
    %p306 = por %p304, %p305
    %p307 = scmp.ne.s32.totalorder %s293, %s294
    %p308 = scmp.eq.s32.totalorder %s24, 1
    %p309 = por %p307, %p308
    %p311 = scmp.ne.s32.totalorder %s294, %s310
    %p312 = scmp.eq.s32.totalorder %s24, 0
    %p313 = por %p311, %p312
    %p314 = scmp.le.s32.totalorder 1, %s18
    %p315 = scmp.lt.s32.totalorder %s18, 3
    %p316 = pnand %p314, %p315
    %p317 = pneg %p316
    // Predicated region
    $region9: #{tpu_custom_call.1} parent=5 // pred_check
      _
    $region10: #{tpu_custom_call.1} parent=5 // pred_check_branch
      %319 = sbr.rel (%p316) target = $region12
    $region11: #{tpu_custom_call.1} parent=5 // pred_region
      %s320 = ssub.s32 %s18, 1
      // Predicated region
      $region13: #{tpu_custom_call.1} parent=11 // pred_check
        %p321 = pneg %p91
      $region14: #{tpu_custom_call.1} parent=11 // pred_check_branch
        %323 = sbr.rel (%p321) target = $region16
      $region15: #{tpu_custom_call.1} parent=11 // pred_region
        _
      $region16: #{tpu_custom_call.1} parent=11 // pred_fallthru
        _
      // Predicated region
      $region17: #{tpu_custom_call.1} parent=11 // pred_check
        %p324 = pneg %p112
      $region18: #{tpu_custom_call.1} parent=11 // pred_check_branch
        %326 = sbr.rel (%p324) target = $region20
      $region19: #{tpu_custom_call.1} parent=11 // pred_region
        _
      $region20: #{tpu_custom_call.1} parent=11 // pred_fallthru
        _
      // Predicated region
      $region21: #{tpu_custom_call.1} parent=11 // pred_check
        %p327 = pneg %p133
      $region22: #{tpu_custom_call.1} parent=11 // pred_check_branch
        %329 = sbr.rel (%p327) target = $region24
      $region23: #{tpu_custom_call.1} parent=11 // pred_region
        _
      $region24: #{tpu_custom_call.1} parent=11 // pred_fallthru
        _
      // Predicated region
      $region25: #{tpu_custom_call.1} parent=11 // pred_check
        %p330 = pneg %p154
      $region26: #{tpu_custom_call.1} parent=11 // pred_check_branch
        %332 = sbr.rel (%p330) target = $region28
      $region27: #{tpu_custom_call.1} parent=11 // pred_region
        _
      $region28: #{tpu_custom_call.1} parent=11 // pred_fallthru
        _
      // Predicated region
      $region29: #{tpu_custom_call.1} parent=11 // pred_check
        %p333 = pneg %p175
      $region30: #{tpu_custom_call.1} parent=11 // pred_check_branch
        %335 = sbr.rel (%p333) target = $region32
      $region31: #{tpu_custom_call.1} parent=11 // pred_region
        _
      $region32: #{tpu_custom_call.1} parent=11 // pred_fallthru
        _
      // Predicated region
      $region33: #{tpu_custom_call.1} parent=11 // pred_check
        %p336 = pneg %p196
      $region34: #{tpu_custom_call.1} parent=11 // pred_check_branch
        %338 = sbr.rel (%p336) target = $region36
      $region35: #{tpu_custom_call.1} parent=11 // pred_region
        _
      $region36: #{tpu_custom_call.1} parent=11 // pred_fallthru
        _
      // Predicated region
      $region37: #{tpu_custom_call.1} parent=11 // pred_check
        %p339 = pneg %p217
      $region38: #{tpu_custom_call.1} parent=11 // pred_check_branch
        %341 = sbr.rel (%p339) target = $region40
      $region39: #{tpu_custom_call.1} parent=11 // pred_region
        _
      $region40: #{tpu_custom_call.1} parent=11 // pred_fallthru
        _
      // Predicated region
      $region41: #{tpu_custom_call.1} parent=11 // pred_check
        %p342 = pneg %p238
      $region42: #{tpu_custom_call.1} parent=11 // pred_check_branch
        %344 = sbr.rel (%p342) target = $region44
      $region43: #{tpu_custom_call.1} parent=11 // pred_region
        _
      $region44: #{tpu_custom_call.1} parent=11 // pred_fallthru
        _
      // Predicated region
      $region45: #{tpu_custom_call.1} parent=11 // pred_check
        %p345 = pneg %p259
      $region46: #{tpu_custom_call.1} parent=11 // pred_check_branch
        %347 = sbr.rel (%p345) target = $region48
      $region47: #{tpu_custom_call.1} parent=11 // pred_region
        _
      $region48: #{tpu_custom_call.1} parent=11 // pred_fallthru
        _
      // Predicated region
      $region49: #{tpu_custom_call.1} parent=11 // pred_check
        %p348 = pneg %p280
      $region50: #{tpu_custom_call.1} parent=11 // pred_check_branch
        %350 = sbr.rel (%p348) target = $region52
      $region51: #{tpu_custom_call.1} parent=11 // pred_region
        _
      $region52: #{tpu_custom_call.1} parent=11 // pred_fallthru
        _
    $region12: #{tpu_custom_call.1} parent=5 // pred_fallthru
      _
    %p351 = scmp.lt.s32.totalorder %s18, 2
    // Predicated region
    $region53: #{tpu_custom_call.1} parent=5 // pred_check
      %p352 = pneg %p351
    $region54: #{tpu_custom_call.1} parent=5 // pred_check_branch
      %354 = sbr.rel (%p352) target = $region56
    $region55: #{tpu_custom_call.1} parent=5 // pred_region
      // Predicated region
      $region57: #{tpu_custom_call.1} parent=55 // pred_check
        %p355 = pneg %p38
      $region58: #{tpu_custom_call.1} parent=55 // pred_check_branch
        %357 = sbr.rel (%p355) target = $region60
      $region59: #{tpu_custom_call.1} parent=55 // pred_region
        %p358 = scmp.lt.s32.totalorder %s18, 1
        %s359 = scalar_select %p358, %s18, 1
        %s360 = smul.addr %s359, 8
        %s361 = smul.addr %s360, 8
        %s362 = scalar_lea.vmem %s0, %s361
      $region60: #{tpu_custom_call.1} parent=55 // pred_fallthru
        _
      // Predicated region
      $region61: #{tpu_custom_call.1} parent=55 // pred_check
        %p363 = pneg %p64
      $region62: #{tpu_custom_call.1} parent=55 // pred_check_branch
        %365 = sbr.rel (%p363) target = $region64
      $region63: #{tpu_custom_call.1} parent=55 // pred_region
        %p366 = scmp.lt.s32.totalorder %s18, 1
        %s367 = scalar_select %p366, %s18, 1
        %s368 = smul.addr %s367, 32
        %s369 = smul.addr %s368, 8
        %s370 = scalar_lea.vmem %s1, %s369
      $region64: #{tpu_custom_call.1} parent=55 // pred_fallthru
        _
    $region56: #{tpu_custom_call.1} parent=5 // pred_fallthru
      _
    %p371 = scmp.le.s32.totalorder 1, %s18
    %p372 = scmp.lt.s32.totalorder %s18, 3
    %p373 = pnand %p371, %p372
    %p374 = pneg %p373
    // Predicated region
    $region65: #{tpu_custom_call.1} parent=5 // pred_check
      _
    $region66: #{tpu_custom_call.1} parent=5 // pred_check_branch
      %376 = sbr.rel (%p373) target = $region68
    $region67: #{tpu_custom_call.1} parent=5 // pred_region
      %s377 = ssub.s32 %s18, 1
      %p378 = scmp.lt.s32.totalorder %s23, 1
      %s379 = scalar_select %p378, %s23, 1
      %s380 = smul.addr %s379, 8
      %s381 = smul.addr %s380, 8
      %s382 = scalar_lea.vmem %s0, %s381
      %p383 = pneg %p44
      %p384 = pneg %p41
      %p385 = scmp.lt.s32.totalorder %s23, 1
      %s386 = scalar_select %p385, %s23, 1
      %s387 = smul.addr %s386, 32
      %s388 = smul.addr %s387, 8
      %s389 = scalar_lea.vmem %s1, %s388
      %p390 = pneg %p70
      %p391 = pneg %p67
      %p392 = pneg %p91
      %p393 = pneg %p88
      %p394 = pneg %p112
      %p395 = pneg %p109
      %p396 = pneg %p133
      %p397 = pneg %p130
      %p398 = pneg %p154
      %p399 = pneg %p151
      %p400 = pneg %p175
      %p401 = pneg %p172
      %p402 = pneg %p196
      %p403 = pneg %p193
      %p404 = pneg %p217
      %p405 = pneg %p214
      %p406 = pneg %p238
      %p407 = pneg %p235
      %p408 = pneg %p259
      %p409 = pneg %p256
      %p410 = pneg %p280
      %p411 = pneg %p277
      %p412 = pneg %p306
      %p413 = pneg %p303
      %p414 = scmp.lt.s32.totalorder %s23, 1
      %s415 = scalar_select %p414, %s23, 1
      %s416 = smul.addr %s415, 32
      %s417 = smul.addr %s416, 8
      %s418 = scalar_lea.vmem %s12, %s417
      %p419 = scmp.lt.s32.totalorder %s23, 1
      %s420 = scalar_select %p419, %s23, 1
      %s421 = smul.addr %s420, 8
      %s422 = smul.addr %s421, 8
      %s423 = scalar_lea.vmem %s0, %s422
      %p424 = scmp.lt.s32.totalorder %s23, 1
      %s425 = scalar_select %p424, %s23, 1
      %s426 = smul.addr %s425, 32
      %s427 = smul.addr %s426, 8
      %s428 = scalar_lea.vmem %s1, %s427
      %p429 = scmp.lt.s32.totalorder %s23, 1
      %s430 = scalar_select %p429, %s23, 1
      %s431 = smul.addr %s430, 32
      %s432 = smul.addr %s431, 8
      %s433 = scalar_lea.vmem %s12, %s432
      %v434 = vld [vmem:[%s423] sm:$0xff]
      %v435 = vld [vmem:[%s423 + $0x8] sm:$0xff]
      %v436 = vld [vmem:[%s423 + $0x10] sm:$0xff]
      %v437 = vld [vmem:[%s423 + $0x18] sm:$0xff]
      %v438 = vld [vmem:[%s423 + $0x20] sm:$0xff]
      %v439 = vld [vmem:[%s423 + $0x28] sm:$0xff]
      %v440 = vld [vmem:[%s423 + $0x30] sm:$0xff]
      %v441 = vld [vmem:[%s423 + $0x38] sm:$0xff]
      %v442 = vld [vmem:[%s428] sm:$0xff]
      %v443 = vld [vmem:[%s428 + $0x8] sm:$0xff]
      %v444 = vld [vmem:[%s428 + $0x10] sm:$0xff]
      %v445 = vld [vmem:[%s428 + $0x18] sm:$0xff]
      %v446 = vld [vmem:[%s428 + $0x20] sm:$0xff]
      %v447 = vld [vmem:[%s428 + $0x28] sm:$0xff]
      %v448 = vld [vmem:[%s428 + $0x30] sm:$0xff]
      %v449 = vld [vmem:[%s428 + $0x38] sm:$0xff]
      %v450 = vld [vmem:[%s428 + $0x40] sm:$0xff]
      %v451 = vld [vmem:[%s428 + $0x48] sm:$0xff]
      %v452 = vld [vmem:[%s428 + $0x50] sm:$0xff]
      %v453 = vld [vmem:[%s428 + $0x58] sm:$0xff]
      %v454 = vld [vmem:[%s428 + $0x60] sm:$0xff]
      %v455 = vld [vmem:[%s428 + $0x68] sm:$0xff]
      %v456 = vld [vmem:[%s428 + $0x70] sm:$0xff]
      %v457 = vld [vmem:[%s428 + $0x78] sm:$0xff]
      %v458 = vld [vmem:[%s428 + $0x80] sm:$0xff]
      %v459 = vld [vmem:[%s428 + $0x88] sm:$0xff]
      %v460 = vld [vmem:[%s428 + $0x90] sm:$0xff]
      %v461 = vld [vmem:[%s428 + $0x98] sm:$0xff]
      %v462 = vld [vmem:[%s428 + $0xa0] sm:$0xff]
      %v463 = vld [vmem:[%s428 + $0xa8] sm:$0xff]
      %v464 = vld [vmem:[%s428 + $0xb0] sm:$0xff]
      %v465 = vld [vmem:[%s428 + $0xb8] sm:$0xff]
      %v466 = vld [vmem:[%s428 + $0xc0] sm:$0xff]
      %v467 = vld [vmem:[%s428 + $0xc8] sm:$0xff]
      %v468 = vld [vmem:[%s428 + $0xd0] sm:$0xff]
      %v469 = vld [vmem:[%s428 + $0xd8] sm:$0xff]
      %v470 = vld [vmem:[%s428 + $0xe0] sm:$0xff]
      %v471 = vld [vmem:[%s428 + $0xe8] sm:$0xff]
      %v472 = vld [vmem:[%s428 + $0xf0] sm:$0xff]
      %v473 = vld [vmem:[%s428 + $0xf8] sm:$0xff]
      %v474 = vld [vmem:[%s3] sm:$0xf]
      %v475 = vld [vmem:[%s4] sm:$0x1]
      %v477 = vlaneseq
      %v478 = vshrl.u32 %v477, 7
      %v479 = vsub.s32 0, %v478
      %v480 = vrot.slane %v475, %v479
      %vm482 = vcmask 31744
      %v484 = vsel %vm482, %v434, 0
      %v487 = vsel %vm482, %v435, 0
      %v490 = vsel %vm482, %v436, 0
      %v493 = vsel %vm482, %v437, 0
      %v496 = vsel %vm482, %v438, 0
      %v499 = vsel %vm482, %v439, 0
      %v502 = vsel %vm482, %v440, 0
      %v505 = vsel %vm482, %v441, 0
      %vm507 = vcmask 1043456
      %v509 = vsel %vm507, %v474, 0
      %511 = vmatprep.subr.mxu0 0.0
      %512 = vmatpush1.msra.mxu0 %v509
      %513 = vmatprep.subr.mxu0 0.0
      %514 = vmatpush1.msra.mxu0 0.0
      %515 = vmatprep.subr.mxu0 0.0
      %516 = vmatpush1.msra.mxu0 0.0
      %517 = vmatprep.subr.mxu0 0.0
      %518 = vmatpush1.msra.mxu0 0.0
      %519 = vmatprep.subr.mxu0 0.0
      %520 = vmatpush1.msra.mxu0 0.0
      %521 = vmatprep.subr.mxu0 0.0
      %522 = vmatpush1.msra.mxu0 0.0
      %523 = vmatprep.subr.mxu0 0.0
      %524 = vmatpush1.msra.mxu0 0.0
      %525 = vmatprep.subr.mxu0 0.0
      %526 = vmatpush1.msra.mxu0 0.0
      %527 = vmatprep.subr.mxu0 0.0
      %528 = vmatpush1.msra.mxu0 0.0
      %529 = vmatprep.subr.mxu0 0.0
      %530 = vmatpush1.msra.mxu0 0.0
      %531 = vmatprep.subr.mxu0 0.0
      %532 = vmatpush1.msra.mxu0 0.0
      %533 = vmatprep.subr.mxu0 0.0
      %534 = vmatpush1.msra.mxu0 0.0
      %535 = vmatprep.subr.mxu0 0.0
      %536 = vmatpush1.msra.mxu0 0.0
      %537 = vmatprep.subr.mxu0 0.0
      %538 = vmatpush1.msra.mxu0 0.0
      %539 = vmatprep.subr.mxu0 0.0
      %540 = vmatpush1.msra.mxu0 0.0
      %541 = vmatprep.subr.mxu0 0.0
      %542 = vmatpush1.msra.mxu0 0.0
      %543 = vmatprep.subr.mxu0 0.0
      %544 = vmatpush1.msra.mxu0 0.0
      %545 = vmatprep.subr.mxu0 0.0
      %546 = vmatpush1.msra.mxu0 0.0
      %547 = vmatprep.subr.mxu0 0.0
      %548 = vmatpush1.msra.mxu0 0.0
      %549 = vmatprep.subr.mxu0 0.0
      %550 = vmatpush1.msra.mxu0 0.0
      %551 = vmatprep.subr.mxu0 0.0
      %552 = vmatpush1.msra.mxu0 0.0
      %553 = vmatprep.subr.mxu0 0.0
      %554 = vmatpush1.msra.mxu0 0.0
      %555 = vmatprep.subr.mxu0 0.0
      %556 = vmatpush1.msra.mxu0 0.0
      %557 = vmatprep.subr.mxu0 0.0
      %558 = vmatpush1.msra.mxu0 0.0
      %559 = vmatprep.subr.mxu0 0.0
      %560 = vmatpush1.msra.mxu0 0.0
      %561 = vmatprep.subr.mxu0 0.0
      %562 = vmatpush1.msra.mxu0 0.0
      %563 = vmatprep.subr.mxu0 0.0
      %564 = vmatpush1.msra.mxu0 0.0
      %565 = vmatprep.subr.mxu0 0.0
      %566 = vmatpush1.msra.mxu0 0.0
      %567 = vmatprep.subr.mxu0 0.0
      %568 = vmatpush1.msra.mxu0 0.0
      %569 = vmatprep.subr.mxu0 0.0
      %570 = vmatpush1.msra.mxu0 0.0
      %571 = vmatprep.subr.mxu0 0.0
      %572 = vmatpush1.msra.mxu0 0.0
      %573 = vmatprep.subr.mxu0 0.0
      %574 = vmatpush1.msra.mxu0 0.0
      %575 = vmatprep.mubr.f32.mxu0 0.0
      %576 = vmatmul.mubr.f32.gmra.mrb[0].mxu0 %v484
      %v577 = vpop.f32.mrb[0].mxu0
      %v578 = vadd.f32 %v480, %v577
      %v579 = vpop.f32.mrb[0].mxu0
      %580 = vmatprep.mubr.f32.mxu0 0.0
      %581 = vmatmul.mubr.f32.gmra.mrb[0].mxu0 %v487
      %v582 = vpop.f32.mrb[0].mxu0
      %v583 = vadd.f32 %v480, %v582
      %v584 = vpop.f32.mrb[0].mxu0
      %585 = vmatprep.mubr.f32.mxu0 0.0
      %586 = vmatmul.mubr.f32.gmra.mrb[0].mxu0 %v490
      %v587 = vpop.f32.mrb[0].mxu0
      %v588 = vadd.f32 %v480, %v587
      %v589 = vpop.f32.mrb[0].mxu0
      %590 = vmatprep.mubr.f32.mxu0 0.0
      %591 = vmatmul.mubr.f32.gmra.mrb[0].mxu0 %v493
      %v592 = vpop.f32.mrb[0].mxu0
      %v593 = vadd.f32 %v480, %v592
      %v594 = vpop.f32.mrb[0].mxu0
      %595 = vmatprep.mubr.f32.mxu0 0.0
      %596 = vmatmul.mubr.f32.gmra.mrb[0].mxu0 %v496
      %v597 = vpop.f32.mrb[0].mxu0
      %v598 = vadd.f32 %v480, %v597
      %v599 = vpop.f32.mrb[0].mxu0
      %600 = vmatprep.mubr.f32.mxu0 0.0
      %601 = vmatmul.mubr.f32.gmra.mrb[0].mxu0 %v499
      %v602 = vpop.f32.mrb[0].mxu0
      %v603 = vadd.f32 %v480, %v602
      %v604 = vpop.f32.mrb[0].mxu0
      %605 = vmatprep.mubr.f32.mxu0 0.0
      %606 = vmatmul.mubr.f32.gmra.mrb[0].mxu0 %v502
      %v607 = vpop.f32.mrb[0].mxu0
      %v608 = vadd.f32 %v480, %v607
      %v609 = vpop.f32.mrb[0].mxu0
      %610 = vmatprep.mubr.f32.mxu0 0.0
      %611 = vmatmul.mubr.f32.gmra.mrb[0].mxu0 %v505
      %v612 = vpop.f32.mrb[0].mxu0
      %v613 = vadd.f32 %v480, %v612
      %v614 = vpop.f32.mrb[0].mxu0
      %615 = vdwg.mxu0
      %v616 = vld [vmem:[%s2] sm:$0xff]
      %v617 = vld [vmem:[%s2 + $0x8] sm:$0xff]
      %v618 = vld [vmem:[%s2 + $0x10] sm:$0xff]
      %v619 = vld [vmem:[%s2 + $0x18] sm:$0xff]
      %v620 = vld [vmem:[%s2 + $0x20] sm:$0xff]
      %v621 = vld [vmem:[%s2 + $0x28] sm:$0xff]
      %v622 = vld [vmem:[%s2 + $0x30] sm:$0xff]
      %v623 = vld [vmem:[%s2 + $0x38] sm:$0xff]
      %v624 = vld [vmem:[%s2 + $0x40] sm:$0xff]
      %v625 = vld [vmem:[%s2 + $0x48] sm:$0xff]
      %v626 = vld [vmem:[%s2 + $0x50] sm:$0xff]
      %v627 = vld [vmem:[%s2 + $0x58] sm:$0xff]
      %v628 = vld [vmem:[%s2 + $0x60] sm:$0xff]
      %v629 = vld [vmem:[%s2 + $0x68] sm:$0xff]
      %v630 = vld [vmem:[%s2 + $0x70] sm:$0xff]
      %v631 = vld [vmem:[%s2 + $0x78] sm:$0xff]
      %v632 = vld [vmem:[%s2 + $0x80] sm:$0xff]
      %v633 = vld [vmem:[%s2 + $0x88] sm:$0xff]
      %v634 = vld [vmem:[%s2 + $0x90] sm:$0xff]
      %v635 = vld [vmem:[%s2 + $0x98] sm:$0xff]
      %v636 = vld [vmem:[%s2 + $0xa0] sm:$0xff]
      %v637 = vld [vmem:[%s2 + $0xa8] sm:$0xff]
      %v638 = vld [vmem:[%s2 + $0xb0] sm:$0xff]
      %v639 = vld [vmem:[%s2 + $0xb8] sm:$0xff]
      %v640 = vld [vmem:[%s2 + $0xc0] sm:$0xff]
      %v641 = vld [vmem:[%s2 + $0xc8] sm:$0xff]
      %v642 = vld [vmem:[%s2 + $0xd0] sm:$0xff]
      %v643 = vld [vmem:[%s2 + $0xd8] sm:$0xff]
      %v644 = vld [vmem:[%s2 + $0xe0] sm:$0xff]
      %v645 = vld [vmem:[%s2 + $0xe8] sm:$0xff]
      %v646 = vld [vmem:[%s2 + $0xf0] sm:$0xff]
      %v647 = vld [vmem:[%s2 + $0xf8] sm:$0xff]
      %vm648 = vcmask 523264
      %v650 = vsel %vm648, %v616, 0
      %v653 = vsel %vm648, %v617, 0
      %v656 = vsel %vm648, %v618, 0
      %v659 = vsel %vm648, %v619, 0
      %v662 = vsel %vm648, %v620, 0
      %v665 = vsel %vm648, %v621, 0
      %v668 = vsel %vm648, %v622, 0
      %v671 = vsel %vm648, %v623, 0
      %v674 = vsel %vm648, %v624, 0
      %v677 = vsel %vm648, %v625, 0
      %v680 = vsel %vm648, %v626, 0
      %v683 = vsel %vm648, %v627, 0
      %v686 = vsel %vm648, %v628, 0
      %v689 = vsel %vm648, %v629, 0
      %v692 = vsel %vm648, %v630, 0
      %v695 = vsel %vm648, %v631, 0
      %v698 = vsel %vm648, %v632, 0
      %v701 = vsel %vm648, %v633, 0
      %v704 = vsel %vm648, %v634, 0
      %v707 = vsel %vm648, %v635, 0
      %v710 = vsel %vm648, %v636, 0
      %v713 = vsel %vm648, %v637, 0
      %v716 = vsel %vm648, %v638, 0
      %v719 = vsel %vm648, %v639, 0
      %v722 = vsel %vm648, %v640, 0
      %v725 = vsel %vm648, %v641, 0
      %v728 = vsel %vm648, %v642, 0
      %v731 = vsel %vm648, %v643, 0
      %v734 = vsel %vm648, %v644, 0
      %v737 = vsel %vm648, %v645, 0
      %v740 = vsel %vm648, %v646, 0
      %v743 = vsel %vm648, %v647, 0
      %745 = vmatprep.subr.mxu0 0.0
      %746 = vmatpush1.msra.mxu0 %v578
      %747 = vmatprep.subr.mxu0 0.0
      %748 = vmatpush1.msra.mxu0 %v583
      %749 = vmatprep.subr.mxu0 0.0
      %750 = vmatpush1.msra.mxu0 %v588
      %751 = vmatprep.subr.mxu0 0.0
      %752 = vmatpush1.msra.mxu0 %v593
      %753 = vmatprep.subr.mxu0 0.0
      %754 = vmatpush1.msra.mxu0 %v598
      %755 = vmatprep.subr.mxu0 0.0
      %756 = vmatpush1.msra.mxu0 %v603
      %757 = vmatprep.subr.mxu0 0.0
      %758 = vmatpush1.msra.mxu0 %v608
      %759 = vmatprep.subr.mxu0 0.0
      %760 = vmatpush1.msra.mxu0 %v613
      %761 = vmatprep.subr.mxu0 0.0
      %762 = vmatpush1.msra.mxu0 0.0
      %763 = vmatprep.subr.mxu0 0.0
      %764 = vmatpush1.msra.mxu0 0.0
      %765 = vmatprep.subr.mxu0 0.0
      %766 = vmatpush1.msra.mxu0 0.0
      %767 = vmatprep.subr.mxu0 0.0
      %768 = vmatpush1.msra.mxu0 0.0
      %769 = vmatprep.subr.mxu0 0.0
      %770 = vmatpush1.msra.mxu0 0.0
      %771 = vmatprep.subr.mxu0 0.0
      %772 = vmatpush1.msra.mxu0 0.0
      %773 = vmatprep.subr.mxu0 0.0
      %774 = vmatpush1.msra.mxu0 0.0
      %775 = vmatprep.subr.mxu0 0.0
      %776 = vmatpush1.msra.mxu0 0.0
      %777 = vmatprep.subr.mxu0 0.0
      %778 = vmatpush1.msra.mxu0 0.0
      %779 = vmatprep.subr.mxu0 0.0
      %780 = vmatpush1.msra.mxu0 0.0
      %781 = vmatprep.subr.mxu0 0.0
      %782 = vmatpush1.msra.mxu0 0.0
      %783 = vmatprep.subr.mxu0 0.0
      %784 = vmatpush1.msra.mxu0 0.0
      %785 = vmatprep.subr.mxu0 0.0
      %786 = vmatpush1.msra.mxu0 0.0
      %787 = vmatprep.subr.mxu0 0.0
      %788 = vmatpush1.msra.mxu0 0.0
      %789 = vmatprep.subr.mxu0 0.0
      %790 = vmatpush1.msra.mxu0 0.0
      %791 = vmatprep.subr.mxu0 0.0
      %792 = vmatpush1.msra.mxu0 0.0
      %793 = vmatprep.subr.mxu0 0.0
      %794 = vmatpush1.msra.mxu0 0.0
      %795 = vmatprep.subr.mxu0 0.0
      %796 = vmatpush1.msra.mxu0 0.0
      %797 = vmatprep.subr.mxu0 0.0
      %798 = vmatpush1.msra.mxu0 0.0
      %799 = vmatprep.subr.mxu0 0.0
      %800 = vmatpush1.msra.mxu0 0.0
      %801 = vmatprep.subr.mxu0 0.0
      %802 = vmatpush1.msra.mxu0 0.0
      %803 = vmatprep.subr.mxu0 0.0
      %804 = vmatpush1.msra.mxu0 0.0
      %805 = vmatprep.subr.mxu0 0.0
      %806 = vmatpush1.msra.mxu0 0.0
      %807 = vmatprep.subr.mxu0 0.0
      %808 = vmatpush1.msra.mxu0 0.0
      %809 = vmatprep.mubr.f32.mxu0 0.0
      %810 = vmatmul.mubr.f32.gmra.mrb[0].mxu0 %v650
      %v811 = vpop.f32.mrb[0].mxu0
      %v812 = vadd.f32 0.0, %v811
      %v813 = vpop.f32.mrb[0].mxu0
      %814 = vmatprep.mubr.f32.mxu0 0.0
      %815 = vmatmul.mubr.f32.gmra.mrb[0].mxu0 %v653
      %v816 = vpop.f32.mrb[0].mxu0
      %v817 = vadd.f32 0.0, %v816
      %v818 = vpop.f32.mrb[0].mxu0
      %819 = vmatprep.mubr.f32.mxu0 0.0
      %820 = vmatmul.mubr.f32.gmra.mrb[0].mxu0 %v656
      %v821 = vpop.f32.mrb[0].mxu0
      %v822 = vadd.f32 0.0, %v821
      %v823 = vpop.f32.mrb[0].mxu0
      %824 = vmatprep.mubr.f32.mxu0 0.0
      %825 = vmatmul.mubr.f32.gmra.mrb[0].mxu0 %v659
      %v826 = vpop.f32.mrb[0].mxu0
      %v827 = vadd.f32 0.0, %v826
      %v828 = vpop.f32.mrb[0].mxu0
      %829 = vmatprep.mubr.f32.mxu0 0.0
      %830 = vmatmul.mubr.f32.gmra.mrb[0].mxu0 %v662
      %v831 = vpop.f32.mrb[0].mxu0
      %v832 = vadd.f32 0.0, %v831
      %v833 = vpop.f32.mrb[0].mxu0
      %834 = vmatprep.mubr.f32.mxu0 0.0
      %835 = vmatmul.mubr.f32.gmra.mrb[0].mxu0 %v665
      %v836 = vpop.f32.mrb[0].mxu0
      %v837 = vadd.f32 0.0, %v836
      %v838 = vpop.f32.mrb[0].mxu0
      %839 = vmatprep.mubr.f32.mxu0 0.0
      %840 = vmatmul.mubr.f32.gmra.mrb[0].mxu0 %v668
      %v841 = vpop.f32.mrb[0].mxu0
      %v842 = vadd.f32 0.0, %v841
      %v843 = vpop.f32.mrb[0].mxu0
      %844 = vmatprep.mubr.f32.mxu0 0.0
      %845 = vmatmul.mubr.f32.gmra.mrb[0].mxu0 %v671
      %v846 = vpop.f32.mrb[0].mxu0
      %v847 = vadd.f32 0.0, %v846
      %v848 = vpop.f32.mrb[0].mxu0
      %849 = vmatprep.mubr.f32.mxu0 0.0
      %850 = vmatmul.mubr.f32.gmra.mrb[0].mxu0 %v674
      %v851 = vpop.f32.mrb[0].mxu0
      %v852 = vadd.f32 0.0, %v851
      %v853 = vpop.f32.mrb[0].mxu0
      %854 = vmatprep.mubr.f32.mxu0 0.0
      %855 = vmatmul.mubr.f32.gmra.mrb[0].mxu0 %v677
      %v856 = vpop.f32.mrb[0].mxu0
      %v857 = vadd.f32 0.0, %v856
      %v858 = vpop.f32.mrb[0].mxu0
      %859 = vmatprep.mubr.f32.mxu0 0.0
      %860 = vmatmul.mubr.f32.gmra.mrb[0].mxu0 %v680
      %v861 = vpop.f32.mrb[0].mxu0
      %v862 = vadd.f32 0.0, %v861
      %v863 = vpop.f32.mrb[0].mxu0
      %864 = vmatprep.mubr.f32.mxu0 0.0
      %865 = vmatmul.mubr.f32.gmra.mrb[0].mxu0 %v683
      %v866 = vpop.f32.mrb[0].mxu0
      %v867 = vadd.f32 0.0, %v866
      %v868 = vpop.f32.mrb[0].mxu0
      %869 = vmatprep.mubr.f32.mxu0 0.0
      %870 = vmatmul.mubr.f32.gmra.mrb[0].mxu0 %v686
      %v871 = vpop.f32.mrb[0].mxu0
      %v872 = vadd.f32 0.0, %v871
      %v873 = vpop.f32.mrb[0].mxu0
      %874 = vmatprep.mubr.f32.mxu0 0.0
      %875 = vmatmul.mubr.f32.gmra.mrb[0].mxu0 %v689
      %v876 = vpop.f32.mrb[0].mxu0
      %v877 = vadd.f32 0.0, %v876
      %v878 = vpop.f32.mrb[0].mxu0
      %879 = vmatprep.mubr.f32.mxu0 0.0
      %880 = vmatmul.mubr.f32.gmra.mrb[0].mxu0 %v692
      %v881 = vpop.f32.mrb[0].mxu0
      %v882 = vadd.f32 0.0, %v881
      %v883 = vpop.f32.mrb[0].mxu0
      %884 = vmatprep.mubr.f32.mxu0 0.0
      %885 = vmatmul.mubr.f32.gmra.mrb[0].mxu0 %v695
      %v886 = vpop.f32.mrb[0].mxu0
      %v887 = vadd.f32 0.0, %v886
      %v888 = vpop.f32.mrb[0].mxu0
      %889 = vmatprep.mubr.f32.mxu0 0.0
      %890 = vmatmul.mubr.f32.gmra.mrb[0].mxu0 %v698
      %v891 = vpop.f32.mrb[0].mxu0
      %v892 = vadd.f32 0.0, %v891
      %v893 = vpop.f32.mrb[0].mxu0
      %894 = vmatprep.mubr.f32.mxu0 0.0
      %895 = vmatmul.mubr.f32.gmra.mrb[0].mxu0 %v701
      %v896 = vpop.f32.mrb[0].mxu0
      %v897 = vadd.f32 0.0, %v896
      %v898 = vpop.f32.mrb[0].mxu0
      %899 = vmatprep.mubr.f32.mxu0 0.0
      %900 = vmatmul.mubr.f32.gmra.mrb[0].mxu0 %v704
      %v901 = vpop.f32.mrb[0].mxu0
      %v902 = vadd.f32 0.0, %v901
      %v903 = vpop.f32.mrb[0].mxu0
      %904 = vmatprep.mubr.f32.mxu0 0.0
      %905 = vmatmul.mubr.f32.gmra.mrb[0].mxu0 %v707
      %v906 = vpop.f32.mrb[0].mxu0
      %v907 = vadd.f32 0.0, %v906
      %v908 = vpop.f32.mrb[0].mxu0
      %909 = vmatprep.mubr.f32.mxu0 0.0
      %910 = vmatmul.mubr.f32.gmra.mrb[0].mxu0 %v710
      %v911 = vpop.f32.mrb[0].mxu0
      %v912 = vadd.f32 0.0, %v911
      %v913 = vpop.f32.mrb[0].mxu0
      %914 = vmatprep.mubr.f32.mxu0 0.0
      %915 = vmatmul.mubr.f32.gmra.mrb[0].mxu0 %v713
      %v916 = vpop.f32.mrb[0].mxu0
      %v917 = vadd.f32 0.0, %v916
      %v918 = vpop.f32.mrb[0].mxu0
      %919 = vmatprep.mubr.f32.mxu0 0.0
      %920 = vmatmul.mubr.f32.gmra.mrb[0].mxu0 %v716
      %v921 = vpop.f32.mrb[0].mxu0
      %v922 = vadd.f32 0.0, %v921
      %v923 = vpop.f32.mrb[0].mxu0
      %924 = vmatprep.mubr.f32.mxu0 0.0
      %925 = vmatmul.mubr.f32.gmra.mrb[0].mxu0 %v719
      %v926 = vpop.f32.mrb[0].mxu0
      %v927 = vadd.f32 0.0, %v926
      %v928 = vpop.f32.mrb[0].mxu0
      %929 = vmatprep.mubr.f32.mxu0 0.0
      %930 = vmatmul.mubr.f32.gmra.mrb[0].mxu0 %v722
      %v931 = vpop.f32.mrb[0].mxu0
      %v932 = vadd.f32 0.0, %v931
      %v933 = vpop.f32.mrb[0].mxu0
      %934 = vmatprep.mubr.f32.mxu0 0.0
      %935 = vmatmul.mubr.f32.gmra.mrb[0].mxu0 %v725
      %v936 = vpop.f32.mrb[0].mxu0
      %v937 = vadd.f32 0.0, %v936
      %v938 = vpop.f32.mrb[0].mxu0
      %939 = vmatprep.mubr.f32.mxu0 0.0
      %940 = vmatmul.mubr.f32.gmra.mrb[0].mxu0 %v728
      %v941 = vpop.f32.mrb[0].mxu0
      %v942 = vadd.f32 0.0, %v941
      %v943 = vpop.f32.mrb[0].mxu0
      %944 = vmatprep.mubr.f32.mxu0 0.0
      %945 = vmatmul.mubr.f32.gmra.mrb[0].mxu0 %v731
      %v946 = vpop.f32.mrb[0].mxu0
      %v947 = vadd.f32 0.0, %v946
      %v948 = vpop.f32.mrb[0].mxu0
      %949 = vmatprep.mubr.f32.mxu0 0.0
      %950 = vmatmul.mubr.f32.gmra.mrb[0].mxu0 %v734
      %v951 = vpop.f32.mrb[0].mxu0
      %v952 = vadd.f32 0.0, %v951
      %v953 = vpop.f32.mrb[0].mxu0
      %954 = vmatprep.mubr.f32.mxu0 0.0
      %955 = vmatmul.mubr.f32.gmra.mrb[0].mxu0 %v737
      %v956 = vpop.f32.mrb[0].mxu0
      %v957 = vadd.f32 0.0, %v956
      %v958 = vpop.f32.mrb[0].mxu0
      %959 = vmatprep.mubr.f32.mxu0 0.0
      %960 = vmatmul.mubr.f32.gmra.mrb[0].mxu0 %v740
      %v961 = vpop.f32.mrb[0].mxu0
      %v962 = vadd.f32 0.0, %v961
      %v963 = vpop.f32.mrb[0].mxu0
      %964 = vmatprep.mubr.f32.mxu0 0.0
      %965 = vmatmul.mubr.f32.gmra.mrb[0].mxu0 %v743
      %v966 = vpop.f32.mrb[0].mxu0
      %v967 = vadd.f32 0.0, %v966
      %v968 = vpop.f32.mrb[0].mxu0
      %969 = vdwg.mxu0
      %v970 = vld [vmem:[%s5] sm:$0xff]
      %v971 = vld [vmem:[%s6] sm:$0x1]
      %v973 = vlaneseq
      %v974 = vshrl.u32 %v973, 7
      %v975 = vsub.s32 0, %v974
      %v976 = vrot.slane %v971, %v975
      %vm978 = vcmask 64512
      %v980 = vsel %vm978, %v442, 0
      %v983 = vsel %vm978, %v443, 0
      %v986 = vsel %vm978, %v444, 0
      %v989 = vsel %vm978, %v445, 0
      %v992 = vsel %vm978, %v446, 0
      %v995 = vsel %vm978, %v447, 0
      %v998 = vsel %vm978, %v448, 0
      %v1001 = vsel %vm978, %v449, 0
      %v1004 = vsel %vm978, %v450, 0
      %v1007 = vsel %vm978, %v451, 0
      %v1010 = vsel %vm978, %v452, 0
      %v1013 = vsel %vm978, %v453, 0
      %v1016 = vsel %vm978, %v454, 0
      %v1019 = vsel %vm978, %v455, 0
      %v1022 = vsel %vm978, %v456, 0
      %v1025 = vsel %vm978, %v457, 0
      %v1028 = vsel %vm978, %v458, 0
      %v1031 = vsel %vm978, %v459, 0
      %v1034 = vsel %vm978, %v460, 0
      %v1037 = vsel %vm978, %v461, 0
      %v1040 = vsel %vm978, %v462, 0
      %v1043 = vsel %vm978, %v463, 0
      %v1046 = vsel %vm978, %v464, 0
      %v1049 = vsel %vm978, %v465, 0
      %v1052 = vsel %vm978, %v466, 0
      %v1055 = vsel %vm978, %v467, 0
      %v1058 = vsel %vm978, %v468, 0
      %v1061 = vsel %vm978, %v469, 0
      %v1064 = vsel %vm978, %v470, 0
      %v1067 = vsel %vm978, %v471, 0
      %v1070 = vsel %vm978, %v472, 0
      %v1073 = vsel %vm978, %v473, 0
      %1075 = vmatprep.subr.mxu0 0.0
      %1076 = vmatpush1.msra.mxu0 %v970
      %1077 = vmatprep.subr.mxu0 0.0
      %1078 = vmatpush1.msra.mxu0 0.0
      %1079 = vmatprep.subr.mxu0 0.0
      %1080 = vmatpush1.msra.mxu0 0.0
      %1081 = vmatprep.subr.mxu0 0.0
      %1082 = vmatpush1.msra.mxu0 0.0
      %1083 = vmatprep.subr.mxu0 0.0
      %1084 = vmatpush1.msra.mxu0 0.0
      %1085 = vmatprep.subr.mxu0 0.0
      %1086 = vmatpush1.msra.mxu0 0.0
      %1087 = vmatprep.subr.mxu0 0.0
      %1088 = vmatpush1.msra.mxu0 0.0
      %1089 = vmatprep.subr.mxu0 0.0
      %1090 = vmatpush1.msra.mxu0 0.0
      %1091 = vmatprep.subr.mxu0 0.0
      %1092 = vmatpush1.msra.mxu0 0.0
      %1093 = vmatprep.subr.mxu0 0.0
      %1094 = vmatpush1.msra.mxu0 0.0
      %1095 = vmatprep.subr.mxu0 0.0
      %1096 = vmatpush1.msra.mxu0 0.0
      %1097 = vmatprep.subr.mxu0 0.0
      %1098 = vmatpush1.msra.mxu0 0.0
      %1099 = vmatprep.subr.mxu0 0.0
      %1100 = vmatpush1.msra.mxu0 0.0
      %1101 = vmatprep.subr.mxu0 0.0
      %1102 = vmatpush1.msra.mxu0 0.0
      %1103 = vmatprep.subr.mxu0 0.0
      %1104 = vmatpush1.msra.mxu0 0.0
      %1105 = vmatprep.subr.mxu0 0.0
      %1106 = vmatpush1.msra.mxu0 0.0
      %1107 = vmatprep.subr.mxu0 0.0
      %1108 = vmatpush1.msra.mxu0 0.0
      %1109 = vmatprep.subr.mxu0 0.0
      %1110 = vmatpush1.msra.mxu0 0.0
      %1111 = vmatprep.subr.mxu0 0.0
      %1112 = vmatpush1.msra.mxu0 0.0
      %1113 = vmatprep.subr.mxu0 0.0
      %1114 = vmatpush1.msra.mxu0 0.0
      %1115 = vmatprep.subr.mxu0 0.0
      %1116 = vmatpush1.msra.mxu0 0.0
      %1117 = vmatprep.subr.mxu0 0.0
      %1118 = vmatpush1.msra.mxu0 0.0
      %1119 = vmatprep.subr.mxu0 0.0
      %1120 = vmatpush1.msra.mxu0 0.0
      %1121 = vmatprep.subr.mxu0 0.0
      %1122 = vmatpush1.msra.mxu0 0.0
      %1123 = vmatprep.subr.mxu0 0.0
      %1124 = vmatpush1.msra.mxu0 0.0
      %1125 = vmatprep.subr.mxu0 0.0
      %1126 = vmatpush1.msra.mxu0 0.0
      %1127 = vmatprep.subr.mxu0 0.0
      %1128 = vmatpush1.msra.mxu0 0.0
      %1129 = vmatprep.subr.mxu0 0.0
      %1130 = vmatpush1.msra.mxu0 0.0
      %1131 = vmatprep.subr.mxu0 0.0
      %1132 = vmatpush1.msra.mxu0 0.0
      %1133 = vmatprep.subr.mxu0 0.0
      %1134 = vmatpush1.msra.mxu0 0.0
      %1135 = vmatprep.subr.mxu0 0.0
      %1136 = vmatpush1.msra.mxu0 0.0
      %1137 = vmatprep.subr.mxu0 0.0
      %1138 = vmatpush1.msra.mxu0 0.0
      %1139 = vmatprep.mubr.f32.mxu0 0.0
      %1140 = vmatmul.mubr.f32.gmra.mrb[0].mxu0 %v980
      %v1141 = vpop.f32.mrb[0].mxu0
      %v1142 = vadd.f32 %v976, %v1141
      %v1143 = vpop.f32.mrb[0].mxu0
      %1144 = vmatprep.mubr.f32.mxu0 0.0
      %1145 = vmatmul.mubr.f32.gmra.mrb[0].mxu0 %v983
      %v1146 = vpop.f32.mrb[0].mxu0
      %v1147 = vadd.f32 %v976, %v1146
      %v1148 = vpop.f32.mrb[0].mxu0
      %1149 = vmatprep.mubr.f32.mxu0 0.0
      %1150 = vmatmul.mubr.f32.gmra.mrb[0].mxu0 %v986
      %v1151 = vpop.f32.mrb[0].mxu0
      %v1152 = vadd.f32 %v976, %v1151
      %v1153 = vpop.f32.mrb[0].mxu0
      %1154 = vmatprep.mubr.f32.mxu0 0.0
      %1155 = vmatmul.mubr.f32.gmra.mrb[0].mxu0 %v989
      %v1156 = vpop.f32.mrb[0].mxu0
      %v1157 = vadd.f32 %v976, %v1156
      %v1158 = vpop.f32.mrb[0].mxu0
      %1159 = vmatprep.mubr.f32.mxu0 0.0
      %1160 = vmatmul.mubr.f32.gmra.mrb[0].mxu0 %v992
      %v1161 = vpop.f32.mrb[0].mxu0
      %v1162 = vadd.f32 %v976, %v1161
      %v1163 = vpop.f32.mrb[0].mxu0
      %1164 = vmatprep.mubr.f32.mxu0 0.0
      %1165 = vmatmul.mubr.f32.gmra.mrb[0].mxu0 %v995
      %v1166 = vpop.f32.mrb[0].mxu0
      %v1167 = vadd.f32 %v976, %v1166
      %v1168 = vpop.f32.mrb[0].mxu0
      %1169 = vmatprep.mubr.f32.mxu0 0.0
      %1170 = vmatmul.mubr.f32.gmra.mrb[0].mxu0 %v998
      %v1171 = vpop.f32.mrb[0].mxu0
      %v1172 = vadd.f32 %v976, %v1171
      %v1173 = vpop.f32.mrb[0].mxu0
      %1174 = vmatprep.mubr.f32.mxu0 0.0
      %1175 = vmatmul.mubr.f32.gmra.mrb[0].mxu0 %v1001
      %v1176 = vpop.f32.mrb[0].mxu0
      %v1177 = vadd.f32 %v976, %v1176
      %v1178 = vpop.f32.mrb[0].mxu0
      %1179 = vmatprep.mubr.f32.mxu0 0.0
      %1180 = vmatmul.mubr.f32.gmra.mrb[0].mxu0 %v1004
      %v1181 = vpop.f32.mrb[0].mxu0
      %v1182 = vadd.f32 %v976, %v1181
      %v1183 = vpop.f32.mrb[0].mxu0
      %1184 = vmatprep.mubr.f32.mxu0 0.0
      %1185 = vmatmul.mubr.f32.gmra.mrb[0].mxu0 %v1007
      %v1186 = vpop.f32.mrb[0].mxu0
      %v1187 = vadd.f32 %v976, %v1186
      %v1188 = vpop.f32.mrb[0].mxu0
      %1189 = vmatprep.mubr.f32.mxu0 0.0
      %1190 = vmatmul.mubr.f32.gmra.mrb[0].mxu0 %v1010
      %v1191 = vpop.f32.mrb[0].mxu0
      %v1192 = vadd.f32 %v976, %v1191
      %v1193 = vpop.f32.mrb[0].mxu0
      %1194 = vmatprep.mubr.f32.mxu0 0.0
      %1195 = vmatmul.mubr.f32.gmra.mrb[0].mxu0 %v1013
      %v1196 = vpop.f32.mrb[0].mxu0
      %v1197 = vadd.f32 %v976, %v1196
      %v1198 = vpop.f32.mrb[0].mxu0
      %1199 = vmatprep.mubr.f32.mxu0 0.0
      %1200 = vmatmul.mubr.f32.gmra.mrb[0].mxu0 %v1016
      %v1201 = vpop.f32.mrb[0].mxu0
      %v1202 = vadd.f32 %v976, %v1201
      %v1203 = vpop.f32.mrb[0].mxu0
      %1204 = vmatprep.mubr.f32.mxu0 0.0
      %1205 = vmatmul.mubr.f32.gmra.mrb[0].mxu0 %v1019
      %v1206 = vpop.f32.mrb[0].mxu0
      %v1207 = vadd.f32 %v976, %v1206
      %v1208 = vpop.f32.mrb[0].mxu0
      %1209 = vmatprep.mubr.f32.mxu0 0.0
      %1210 = vmatmul.mubr.f32.gmra.mrb[0].mxu0 %v1022
      %v1211 = vpop.f32.mrb[0].mxu0
      %v1212 = vadd.f32 %v976, %v1211
      %v1213 = vpop.f32.mrb[0].mxu0
      %1214 = vmatprep.mubr.f32.mxu0 0.0
      %1215 = vmatmul.mubr.f32.gmra.mrb[0].mxu0 %v1025
      %v1216 = vpop.f32.mrb[0].mxu0
      %v1217 = vadd.f32 %v976, %v1216
      %v1218 = vpop.f32.mrb[0].mxu0
      %1219 = vmatprep.mubr.f32.mxu0 0.0
      %1220 = vmatmul.mubr.f32.gmra.mrb[0].mxu0 %v1028
      %v1221 = vpop.f32.mrb[0].mxu0
      %v1222 = vadd.f32 %v976, %v1221
      %v1223 = vpop.f32.mrb[0].mxu0
      %1224 = vmatprep.mubr.f32.mxu0 0.0
      %1225 = vmatmul.mubr.f32.gmra.mrb[0].mxu0 %v1031
      %v1226 = vpop.f32.mrb[0].mxu0
      %v1227 = vadd.f32 %v976, %v1226
      %v1228 = vpop.f32.mrb[0].mxu0
      %1229 = vmatprep.mubr.f32.mxu0 0.0
      %1230 = vmatmul.mubr.f32.gmra.mrb[0].mxu0 %v1034
      %v1231 = vpop.f32.mrb[0].mxu0
      %v1232 = vadd.f32 %v976, %v1231
      %v1233 = vpop.f32.mrb[0].mxu0
      %1234 = vmatprep.mubr.f32.mxu0 0.0
      %1235 = vmatmul.mubr.f32.gmra.mrb[0].mxu0 %v1037
      %v1236 = vpop.f32.mrb[0].mxu0
      %v1237 = vadd.f32 %v976, %v1236
      %v1238 = vpop.f32.mrb[0].mxu0
      %1239 = vmatprep.mubr.f32.mxu0 0.0
      %1240 = vmatmul.mubr.f32.gmra.mrb[0].mxu0 %v1040
      %v1241 = vpop.f32.mrb[0].mxu0
      %v1242 = vadd.f32 %v976, %v1241
      %v1243 = vpop.f32.mrb[0].mxu0
      %1244 = vmatprep.mubr.f32.mxu0 0.0
      %1245 = vmatmul.mubr.f32.gmra.mrb[0].mxu0 %v1043
      %v1246 = vpop.f32.mrb[0].mxu0
      %v1247 = vadd.f32 %v976, %v1246
      %v1248 = vpop.f32.mrb[0].mxu0
      %1249 = vmatprep.mubr.f32.mxu0 0.0
      %1250 = vmatmul.mubr.f32.gmra.mrb[0].mxu0 %v1046
      %v1251 = vpop.f32.mrb[0].mxu0
      %v1252 = vadd.f32 %v976, %v1251
      %v1253 = vpop.f32.mrb[0].mxu0
      %1254 = vmatprep.mubr.f32.mxu0 0.0
      %1255 = vmatmul.mubr.f32.gmra.mrb[0].mxu0 %v1049
      %v1256 = vpop.f32.mrb[0].mxu0
      %v1257 = vadd.f32 %v976, %v1256
      %v1258 = vpop.f32.mrb[0].mxu0
      %1259 = vmatprep.mubr.f32.mxu0 0.0
      %1260 = vmatmul.mubr.f32.gmra.mrb[0].mxu0 %v1052
      %v1261 = vpop.f32.mrb[0].mxu0
      %v1262 = vadd.f32 %v976, %v1261
      %v1263 = vpop.f32.mrb[0].mxu0
      %1264 = vmatprep.mubr.f32.mxu0 0.0
      %1265 = vmatmul.mubr.f32.gmra.mrb[0].mxu0 %v1055
      %v1266 = vpop.f32.mrb[0].mxu0
      %v1267 = vadd.f32 %v976, %v1266
      %v1268 = vpop.f32.mrb[0].mxu0
      %1269 = vmatprep.mubr.f32.mxu0 0.0
      %1270 = vmatmul.mubr.f32.gmra.mrb[0].mxu0 %v1058
      %v1271 = vpop.f32.mrb[0].mxu0
      %v1272 = vadd.f32 %v976, %v1271
      %v1273 = vpop.f32.mrb[0].mxu0
      %1274 = vmatprep.mubr.f32.mxu0 0.0
      %1275 = vmatmul.mubr.f32.gmra.mrb[0].mxu0 %v1061
      %v1276 = vpop.f32.mrb[0].mxu0
      %v1277 = vadd.f32 %v976, %v1276
      %v1278 = vpop.f32.mrb[0].mxu0
      %1279 = vmatprep.mubr.f32.mxu0 0.0
      %1280 = vmatmul.mubr.f32.gmra.mrb[0].mxu0 %v1064
      %v1281 = vpop.f32.mrb[0].mxu0
      %v1282 = vadd.f32 %v976, %v1281
      %v1283 = vpop.f32.mrb[0].mxu0
      %1284 = vmatprep.mubr.f32.mxu0 0.0
      %1285 = vmatmul.mubr.f32.gmra.mrb[0].mxu0 %v1067
      %v1286 = vpop.f32.mrb[0].mxu0
      %v1287 = vadd.f32 %v976, %v1286
      %v1288 = vpop.f32.mrb[0].mxu0
      %1289 = vmatprep.mubr.f32.mxu0 0.0
      %1290 = vmatmul.mubr.f32.gmra.mrb[0].mxu0 %v1070
      %v1291 = vpop.f32.mrb[0].mxu0
      %v1292 = vadd.f32 %v976, %v1291
      %v1293 = vpop.f32.mrb[0].mxu0
      %1294 = vmatprep.mubr.f32.mxu0 0.0
      %1295 = vmatmul.mubr.f32.gmra.mrb[0].mxu0 %v1073
      %v1296 = vpop.f32.mrb[0].mxu0
      %v1297 = vadd.f32 %v976, %v1296
      %v1298 = vpop.f32.mrb[0].mxu0
      %1299 = vdwg.mxu0
      %v1300 = vld [vmem:[%s7] sm:$0xff]
      %v1301 = vld [vmem:[%s7 + $0x8] sm:$0xff]
      %v1302 = vld [vmem:[%s7 + $0x10] sm:$0xff]
      %v1303 = vld [vmem:[%s7 + $0x18] sm:$0xff]
      %v1304 = vld [vmem:[%s8] sm:$0xff]
      %v1305 = vld [vmem:[%s8 + $0x8] sm:$0xff]
      %v1306 = vld [vmem:[%s8 + $0x10] sm:$0xff]
      %v1307 = vld [vmem:[%s8 + $0x18] sm:$0xff]
      %vm1308 = vcmask 261120
      %v1310 = vsel %vm1308, %v1142, 0
      %v1313 = vsel %vm1308, %v1147, 0
      %v1316 = vsel %vm1308, %v1152, 0
      %v1319 = vsel %vm1308, %v1157, 0
      %v1322 = vsel %vm1308, %v1162, 0
      %v1325 = vsel %vm1308, %v1167, 0
      %v1328 = vsel %vm1308, %v1172, 0
      %v1331 = vsel %vm1308, %v1177, 0
      %v1334 = vsel %vm1308, %v1182, 0
      %v1337 = vsel %vm1308, %v1187, 0
      %v1340 = vsel %vm1308, %v1192, 0
      %v1343 = vsel %vm1308, %v1197, 0
      %v1346 = vsel %vm1308, %v1202, 0
      %v1349 = vsel %vm1308, %v1207, 0
      %v1352 = vsel %vm1308, %v1212, 0
      %v1355 = vsel %vm1308, %v1217, 0
      %v1358 = vsel %vm1308, %v1222, 0
      %v1361 = vsel %vm1308, %v1227, 0
      %v1364 = vsel %vm1308, %v1232, 0
      %v1367 = vsel %vm1308, %v1237, 0
      %v1370 = vsel %vm1308, %v1242, 0
      %v1373 = vsel %vm1308, %v1247, 0
      %v1376 = vsel %vm1308, %v1252, 0
      %v1379 = vsel %vm1308, %v1257, 0
      %v1382 = vsel %vm1308, %v1262, 0
      %v1385 = vsel %vm1308, %v1267, 0
      %v1388 = vsel %vm1308, %v1272, 0
      %v1391 = vsel %vm1308, %v1277, 0
      %v1394 = vsel %vm1308, %v1282, 0
      %v1397 = vsel %vm1308, %v1287, 0
      %v1400 = vsel %vm1308, %v1292, 0
      %v1403 = vsel %vm1308, %v1297, 0
      %1405 = vmatprep.subr.mxu0 0.0
      %1406 = vmatpush1.msra.mxu0 %v1304
      %1407 = vmatprep.subr.mxu0 0.0
      %1408 = vmatpush1.msra.mxu0 %v1305
      %1409 = vmatprep.subr.mxu0 0.0
      %1410 = vmatpush1.msra.mxu0 %v1306
      %1411 = vmatprep.subr.mxu0 0.0
      %1412 = vmatpush1.msra.mxu0 %v1307
      %1413 = vmatprep.subr.mxu0 0.0
      %1414 = vmatpush1.msra.mxu0 0.0
      %1415 = vmatprep.subr.mxu0 0.0
      %1416 = vmatpush1.msra.mxu0 0.0
      %1417 = vmatprep.subr.mxu0 0.0
      %1418 = vmatpush1.msra.mxu0 0.0
      %1419 = vmatprep.subr.mxu0 0.0
      %1420 = vmatpush1.msra.mxu0 0.0
      %1421 = vmatprep.subr.mxu0 0.0
      %1422 = vmatpush1.msra.mxu0 0.0
      %1423 = vmatprep.subr.mxu0 0.0
      %1424 = vmatpush1.msra.mxu0 0.0
      %1425 = vmatprep.subr.mxu0 0.0
      %1426 = vmatpush1.msra.mxu0 0.0
      %1427 = vmatprep.subr.mxu0 0.0
      %1428 = vmatpush1.msra.mxu0 0.0
      %1429 = vmatprep.subr.mxu0 0.0
      %1430 = vmatpush1.msra.mxu0 0.0
      %1431 = vmatprep.subr.mxu0 0.0
      %1432 = vmatpush1.msra.mxu0 0.0
      %1433 = vmatprep.subr.mxu0 0.0
      %1434 = vmatpush1.msra.mxu0 0.0
      %1435 = vmatprep.subr.mxu0 0.0
      %1436 = vmatpush1.msra.mxu0 0.0
      %1437 = vmatprep.subr.mxu0 0.0
      %1438 = vmatpush1.msra.mxu0 0.0
      %1439 = vmatprep.subr.mxu0 0.0
      %1440 = vmatpush1.msra.mxu0 0.0
      %1441 = vmatprep.subr.mxu0 0.0
      %1442 = vmatpush1.msra.mxu0 0.0
      %1443 = vmatprep.subr.mxu0 0.0
      %1444 = vmatpush1.msra.mxu0 0.0
      %1445 = vmatprep.subr.mxu0 0.0
      %1446 = vmatpush1.msra.mxu0 0.0
      %1447 = vmatprep.subr.mxu0 0.0
      %1448 = vmatpush1.msra.mxu0 0.0
      %1449 = vmatprep.subr.mxu0 0.0
      %1450 = vmatpush1.msra.mxu0 0.0
      %1451 = vmatprep.subr.mxu0 0.0
      %1452 = vmatpush1.msra.mxu0 0.0
      %1453 = vmatprep.subr.mxu0 0.0
      %1454 = vmatpush1.msra.mxu0 0.0
      %1455 = vmatprep.subr.mxu0 0.0
      %1456 = vmatpush1.msra.mxu0 0.0
      %1457 = vmatprep.subr.mxu0 0.0
      %1458 = vmatpush1.msra.mxu0 0.0
      %1459 = vmatprep.subr.mxu0 0.0
      %1460 = vmatpush1.msra.mxu0 0.0
      %1461 = vmatprep.subr.mxu0 0.0
      %1462 = vmatpush1.msra.mxu0 0.0
      %1463 = vmatprep.subr.mxu0 0.0
      %1464 = vmatpush1.msra.mxu0 0.0
      %1465 = vmatprep.subr.mxu0 0.0
      %1466 = vmatpush1.msra.mxu0 0.0
      %1467 = vmatprep.subr.mxu0 0.0
      %1468 = vmatpush1.msra.mxu0 0.0
      %1469 = vmatprep.mubr.f32.mxu0 0.0
      %1470 = vmatmul.mubr.f32.gmra.mrb[0].mxu0 %v1310
      %v1471 = vpop.f32.mrb[0].mxu0
      %v1472 = vadd.f32 0.0, %v1471
      %v1473 = vpop.f32.mrb[0].mxu0
      %1474 = vmatprep.mubr.f32.mxu0 0.0
      %1475 = vmatmul.mubr.f32.gmra.mrb[0].mxu0 %v1313
      %v1476 = vpop.f32.mrb[0].mxu0
      %v1477 = vadd.f32 0.0, %v1476
      %v1478 = vpop.f32.mrb[0].mxu0
      %1479 = vmatprep.mubr.f32.mxu0 0.0
      %1480 = vmatmul.mubr.f32.gmra.mrb[0].mxu0 %v1316
      %v1481 = vpop.f32.mrb[0].mxu0
      %v1482 = vadd.f32 0.0, %v1481
      %v1483 = vpop.f32.mrb[0].mxu0
      %1484 = vmatprep.mubr.f32.mxu0 0.0
      %1485 = vmatmul.mubr.f32.gmra.mrb[0].mxu0 %v1319
      %v1486 = vpop.f32.mrb[0].mxu0
      %v1487 = vadd.f32 0.0, %v1486
      %v1488 = vpop.f32.mrb[0].mxu0
      %1489 = vmatprep.mubr.f32.mxu0 0.0
      %1490 = vmatmul.mubr.f32.gmra.mrb[0].mxu0 %v1322
      %v1491 = vpop.f32.mrb[0].mxu0
      %v1492 = vadd.f32 0.0, %v1491
      %v1493 = vpop.f32.mrb[0].mxu0
      %1494 = vmatprep.mubr.f32.mxu0 0.0
      %1495 = vmatmul.mubr.f32.gmra.mrb[0].mxu0 %v1325
      %v1496 = vpop.f32.mrb[0].mxu0
      %v1497 = vadd.f32 0.0, %v1496
      %v1498 = vpop.f32.mrb[0].mxu0
      %1499 = vmatprep.mubr.f32.mxu0 0.0
      %1500 = vmatmul.mubr.f32.gmra.mrb[0].mxu0 %v1328
      %v1501 = vpop.f32.mrb[0].mxu0
      %v1502 = vadd.f32 0.0, %v1501
      %v1503 = vpop.f32.mrb[0].mxu0
      %1504 = vmatprep.mubr.f32.mxu0 0.0
      %1505 = vmatmul.mubr.f32.gmra.mrb[0].mxu0 %v1331
      %v1506 = vpop.f32.mrb[0].mxu0
      %v1507 = vadd.f32 0.0, %v1506
      %v1508 = vpop.f32.mrb[0].mxu0
      %1509 = vmatprep.mubr.f32.mxu0 0.0
      %1510 = vmatmul.mubr.f32.gmra.mrb[0].mxu0 %v1334
      %v1511 = vpop.f32.mrb[0].mxu0
      %v1512 = vadd.f32 0.0, %v1511
      %v1513 = vpop.f32.mrb[0].mxu0
      %1514 = vmatprep.mubr.f32.mxu0 0.0
      %1515 = vmatmul.mubr.f32.gmra.mrb[0].mxu0 %v1337
      %v1516 = vpop.f32.mrb[0].mxu0
      %v1517 = vadd.f32 0.0, %v1516
      %v1518 = vpop.f32.mrb[0].mxu0
      %1519 = vmatprep.mubr.f32.mxu0 0.0
      %1520 = vmatmul.mubr.f32.gmra.mrb[0].mxu0 %v1340
      %v1521 = vpop.f32.mrb[0].mxu0
      %v1522 = vadd.f32 0.0, %v1521
      %v1523 = vpop.f32.mrb[0].mxu0
      %1524 = vmatprep.mubr.f32.mxu0 0.0
      %1525 = vmatmul.mubr.f32.gmra.mrb[0].mxu0 %v1343
      %v1526 = vpop.f32.mrb[0].mxu0
      %v1527 = vadd.f32 0.0, %v1526
      %v1528 = vpop.f32.mrb[0].mxu0
      %1529 = vmatprep.mubr.f32.mxu0 0.0
      %1530 = vmatmul.mubr.f32.gmra.mrb[0].mxu0 %v1346
      %v1531 = vpop.f32.mrb[0].mxu0
      %v1532 = vadd.f32 0.0, %v1531
      %v1533 = vpop.f32.mrb[0].mxu0
      %1534 = vmatprep.mubr.f32.mxu0 0.0
      %1535 = vmatmul.mubr.f32.gmra.mrb[0].mxu0 %v1349
      %v1536 = vpop.f32.mrb[0].mxu0
      %v1537 = vadd.f32 0.0, %v1536
      %v1538 = vpop.f32.mrb[0].mxu0
      %1539 = vmatprep.mubr.f32.mxu0 0.0
      %1540 = vmatmul.mubr.f32.gmra.mrb[0].mxu0 %v1352
      %v1541 = vpop.f32.mrb[0].mxu0
      %v1542 = vadd.f32 0.0, %v1541
      %v1543 = vpop.f32.mrb[0].mxu0
      %1544 = vmatprep.mubr.f32.mxu0 0.0
      %1545 = vmatmul.mubr.f32.gmra.mrb[0].mxu0 %v1355
      %v1546 = vpop.f32.mrb[0].mxu0
      %v1547 = vadd.f32 0.0, %v1546
      %v1548 = vpop.f32.mrb[0].mxu0
      %1549 = vmatprep.mubr.f32.mxu0 0.0
      %1550 = vmatmul.mubr.f32.gmra.mrb[0].mxu0 %v1358
      %v1551 = vpop.f32.mrb[0].mxu0
      %v1552 = vadd.f32 0.0, %v1551
      %v1553 = vpop.f32.mrb[0].mxu0
      %1554 = vmatprep.mubr.f32.mxu0 0.0
      %1555 = vmatmul.mubr.f32.gmra.mrb[0].mxu0 %v1361
      %v1556 = vpop.f32.mrb[0].mxu0
      %v1557 = vadd.f32 0.0, %v1556
      %v1558 = vpop.f32.mrb[0].mxu0
      %1559 = vmatprep.mubr.f32.mxu0 0.0
      %1560 = vmatmul.mubr.f32.gmra.mrb[0].mxu0 %v1364
      %v1561 = vpop.f32.mrb[0].mxu0
      %v1562 = vadd.f32 0.0, %v1561
      %v1563 = vpop.f32.mrb[0].mxu0
      %1564 = vmatprep.mubr.f32.mxu0 0.0
      %1565 = vmatmul.mubr.f32.gmra.mrb[0].mxu0 %v1367
      %v1566 = vpop.f32.mrb[0].mxu0
      %v1567 = vadd.f32 0.0, %v1566
      %v1568 = vpop.f32.mrb[0].mxu0
      %1569 = vmatprep.mubr.f32.mxu0 0.0
      %1570 = vmatmul.mubr.f32.gmra.mrb[0].mxu0 %v1370
      %v1571 = vpop.f32.mrb[0].mxu0
      %v1572 = vadd.f32 0.0, %v1571
      %v1573 = vpop.f32.mrb[0].mxu0
      %1574 = vmatprep.mubr.f32.mxu0 0.0
      %1575 = vmatmul.mubr.f32.gmra.mrb[0].mxu0 %v1373
      %v1576 = vpop.f32.mrb[0].mxu0
      %v1577 = vadd.f32 0.0, %v1576
      %v1578 = vpop.f32.mrb[0].mxu0
      %1579 = vmatprep.mubr.f32.mxu0 0.0
      %1580 = vmatmul.mubr.f32.gmra.mrb[0].mxu0 %v1376
      %v1581 = vpop.f32.mrb[0].mxu0
      %v1582 = vadd.f32 0.0, %v1581
      %v1583 = vpop.f32.mrb[0].mxu0
      %1584 = vmatprep.mubr.f32.mxu0 0.0
      %1585 = vmatmul.mubr.f32.gmra.mrb[0].mxu0 %v1379
      %v1586 = vpop.f32.mrb[0].mxu0
      %v1587 = vadd.f32 0.0, %v1586
      %v1588 = vpop.f32.mrb[0].mxu0
      %1589 = vmatprep.mubr.f32.mxu0 0.0
      %1590 = vmatmul.mubr.f32.gmra.mrb[0].mxu0 %v1382
      %v1591 = vpop.f32.mrb[0].mxu0
      %v1592 = vadd.f32 0.0, %v1591
      %v1593 = vpop.f32.mrb[0].mxu0
      %1594 = vmatprep.mubr.f32.mxu0 0.0
      %1595 = vmatmul.mubr.f32.gmra.mrb[0].mxu0 %v1385
      %v1596 = vpop.f32.mrb[0].mxu0
      %v1597 = vadd.f32 0.0, %v1596
      %v1598 = vpop.f32.mrb[0].mxu0
      %1599 = vmatprep.mubr.f32.mxu0 0.0
      %1600 = vmatmul.mubr.f32.gmra.mrb[0].mxu0 %v1388
      %v1601 = vpop.f32.mrb[0].mxu0
      %v1602 = vadd.f32 0.0, %v1601
      %v1603 = vpop.f32.mrb[0].mxu0
      %1604 = vmatprep.mubr.f32.mxu0 0.0
      %1605 = vmatmul.mubr.f32.gmra.mrb[0].mxu0 %v1391
      %v1606 = vpop.f32.mrb[0].mxu0
      %v1607 = vadd.f32 0.0, %v1606
      %v1608 = vpop.f32.mrb[0].mxu0
      %1609 = vmatprep.mubr.f32.mxu0 0.0
      %1610 = vmatmul.mubr.f32.gmra.mrb[0].mxu0 %v1394
      %v1611 = vpop.f32.mrb[0].mxu0
      %v1612 = vadd.f32 0.0, %v1611
      %v1613 = vpop.f32.mrb[0].mxu0
      %1614 = vmatprep.mubr.f32.mxu0 0.0
      %1615 = vmatmul.mubr.f32.gmra.mrb[0].mxu0 %v1397
      %v1616 = vpop.f32.mrb[0].mxu0
      %v1617 = vadd.f32 0.0, %v1616
      %v1618 = vpop.f32.mrb[0].mxu0
      %1619 = vmatprep.mubr.f32.mxu0 0.0
      %1620 = vmatmul.mubr.f32.gmra.mrb[0].mxu0 %v1400
      %v1621 = vpop.f32.mrb[0].mxu0
      %v1622 = vadd.f32 0.0, %v1621
      %v1623 = vpop.f32.mrb[0].mxu0
      %1624 = vmatprep.mubr.f32.mxu0 0.0
      %1625 = vmatmul.mubr.f32.gmra.mrb[0].mxu0 %v1403
      %v1626 = vpop.f32.mrb[0].mxu0
      %v1627 = vadd.f32 0.0, %v1626
      %v1628 = vpop.f32.mrb[0].mxu0
      %1629 = vdwg.mxu0
      %v1631 = vsel %vm1308, %v812, 0
      %v1634 = vsel %vm1308, %v817, 0
      %v1637 = vsel %vm1308, %v822, 0
      %v1640 = vsel %vm1308, %v827, 0
      %v1643 = vsel %vm1308, %v832, 0
      %v1646 = vsel %vm1308, %v837, 0
      %v1649 = vsel %vm1308, %v842, 0
      %v1652 = vsel %vm1308, %v847, 0
      %v1655 = vsel %vm1308, %v852, 0
      %v1658 = vsel %vm1308, %v857, 0
      %v1661 = vsel %vm1308, %v862, 0
      %v1664 = vsel %vm1308, %v867, 0
      %v1667 = vsel %vm1308, %v872, 0
      %v1670 = vsel %vm1308, %v877, 0
      %v1673 = vsel %vm1308, %v882, 0
      %v1676 = vsel %vm1308, %v887, 0
      %v1679 = vsel %vm1308, %v892, 0
      %v1682 = vsel %vm1308, %v897, 0
      %v1685 = vsel %vm1308, %v902, 0
      %v1688 = vsel %vm1308, %v907, 0
      %v1691 = vsel %vm1308, %v912, 0
      %v1694 = vsel %vm1308, %v917, 0
      %v1697 = vsel %vm1308, %v922, 0
      %v1700 = vsel %vm1308, %v927, 0
      %v1703 = vsel %vm1308, %v932, 0
      %v1706 = vsel %vm1308, %v937, 0
      %v1709 = vsel %vm1308, %v942, 0
      %v1712 = vsel %vm1308, %v947, 0
      %v1715 = vsel %vm1308, %v952, 0
      %v1718 = vsel %vm1308, %v957, 0
      %v1721 = vsel %vm1308, %v962, 0
      %v1724 = vsel %vm1308, %v967, 0
      %1726 = vmatprep.subr.mxu0 0.0
      %1727 = vmatpush1.msra.mxu0 %v1300
      %1728 = vmatprep.subr.mxu0 0.0
      %1729 = vmatpush1.msra.mxu0 %v1301
      %1730 = vmatprep.subr.mxu0 0.0
      %1731 = vmatpush1.msra.mxu0 %v1302
      %1732 = vmatprep.subr.mxu0 0.0
      %1733 = vmatpush1.msra.mxu0 %v1303
      %1734 = vmatprep.subr.mxu0 0.0
      %1735 = vmatpush1.msra.mxu0 0.0
      %1736 = vmatprep.subr.mxu0 0.0
      %1737 = vmatpush1.msra.mxu0 0.0
      %1738 = vmatprep.subr.mxu0 0.0
      %1739 = vmatpush1.msra.mxu0 0.0
      %1740 = vmatprep.subr.mxu0 0.0
      %1741 = vmatpush1.msra.mxu0 0.0
      %1742 = vmatprep.subr.mxu0 0.0
      %1743 = vmatpush1.msra.mxu0 0.0
      %1744 = vmatprep.subr.mxu0 0.0
      %1745 = vmatpush1.msra.mxu0 0.0
      %1746 = vmatprep.subr.mxu0 0.0
      %1747 = vmatpush1.msra.mxu0 0.0
      %1748 = vmatprep.subr.mxu0 0.0
      %1749 = vmatpush1.msra.mxu0 0.0
      %1750 = vmatprep.subr.mxu0 0.0
      %1751 = vmatpush1.msra.mxu0 0.0
      %1752 = vmatprep.subr.mxu0 0.0
      %1753 = vmatpush1.msra.mxu0 0.0
      %1754 = vmatprep.subr.mxu0 0.0
      %1755 = vmatpush1.msra.mxu0 0.0
      %1756 = vmatprep.subr.mxu0 0.0
      %1757 = vmatpush1.msra.mxu0 0.0
      %1758 = vmatprep.subr.mxu0 0.0
      %1759 = vmatpush1.msra.mxu0 0.0
      %1760 = vmatprep.subr.mxu0 0.0
      %1761 = vmatpush1.msra.mxu0 0.0
      %1762 = vmatprep.subr.mxu0 0.0
      %1763 = vmatpush1.msra.mxu0 0.0
      %1764 = vmatprep.subr.mxu0 0.0
      %1765 = vmatpush1.msra.mxu0 0.0
      %1766 = vmatprep.subr.mxu0 0.0
      %1767 = vmatpush1.msra.mxu0 0.0
      %1768 = vmatprep.subr.mxu0 0.0
      %1769 = vmatpush1.msra.mxu0 0.0
      %1770 = vmatprep.subr.mxu0 0.0
      %1771 = vmatpush1.msra.mxu0 0.0
      %1772 = vmatprep.subr.mxu0 0.0
      %1773 = vmatpush1.msra.mxu0 0.0
      %1774 = vmatprep.subr.mxu0 0.0
      %1775 = vmatpush1.msra.mxu0 0.0
      %1776 = vmatprep.subr.mxu0 0.0
      %1777 = vmatpush1.msra.mxu0 0.0
      %1778 = vmatprep.subr.mxu0 0.0
      %1779 = vmatpush1.msra.mxu0 0.0
      %1780 = vmatprep.subr.mxu0 0.0
      %1781 = vmatpush1.msra.mxu0 0.0
      %1782 = vmatprep.subr.mxu0 0.0
      %1783 = vmatpush1.msra.mxu0 0.0
      %1784 = vmatprep.subr.mxu0 0.0
      %1785 = vmatpush1.msra.mxu0 0.0
      %1786 = vmatprep.subr.mxu0 0.0
      %1787 = vmatpush1.msra.mxu0 0.0
      %1788 = vmatprep.subr.mxu0 0.0
      %1789 = vmatpush1.msra.mxu0 0.0
      %1790 = vmatprep.mubr.f32.mxu0 0.0
      %1791 = vmatmul.mubr.f32.gmra.mrb[0].mxu0 %v1631
      %v1792 = vpop.f32.mrb[0].mxu0
      %v1793 = vadd.f32 %v1472, %v1792
      %v1794 = vpop.f32.mrb[0].mxu0
      %1795 = vmatprep.mubr.f32.mxu0 0.0
      %1796 = vmatmul.mubr.f32.gmra.mrb[0].mxu0 %v1634
      %v1797 = vpop.f32.mrb[0].mxu0
      %v1798 = vadd.f32 %v1477, %v1797
      %v1799 = vpop.f32.mrb[0].mxu0
      %1800 = vmatprep.mubr.f32.mxu0 0.0
      %1801 = vmatmul.mubr.f32.gmra.mrb[0].mxu0 %v1637
      %v1802 = vpop.f32.mrb[0].mxu0
      %v1803 = vadd.f32 %v1482, %v1802
      %v1804 = vpop.f32.mrb[0].mxu0
      %1805 = vmatprep.mubr.f32.mxu0 0.0
      %1806 = vmatmul.mubr.f32.gmra.mrb[0].mxu0 %v1640
      %v1807 = vpop.f32.mrb[0].mxu0
      %v1808 = vadd.f32 %v1487, %v1807
      %v1809 = vpop.f32.mrb[0].mxu0
      %1810 = vmatprep.mubr.f32.mxu0 0.0
      %1811 = vmatmul.mubr.f32.gmra.mrb[0].mxu0 %v1643
      %v1812 = vpop.f32.mrb[0].mxu0
      %v1813 = vadd.f32 %v1492, %v1812
      %v1814 = vpop.f32.mrb[0].mxu0
      %1815 = vmatprep.mubr.f32.mxu0 0.0
      %1816 = vmatmul.mubr.f32.gmra.mrb[0].mxu0 %v1646
      %v1817 = vpop.f32.mrb[0].mxu0
      %v1818 = vadd.f32 %v1497, %v1817
      %v1819 = vpop.f32.mrb[0].mxu0
      %1820 = vmatprep.mubr.f32.mxu0 0.0
      %1821 = vmatmul.mubr.f32.gmra.mrb[0].mxu0 %v1649
      %v1822 = vpop.f32.mrb[0].mxu0
      %v1823 = vadd.f32 %v1502, %v1822
      %v1824 = vpop.f32.mrb[0].mxu0
      %1825 = vmatprep.mubr.f32.mxu0 0.0
      %1826 = vmatmul.mubr.f32.gmra.mrb[0].mxu0 %v1652
      %v1827 = vpop.f32.mrb[0].mxu0
      %v1828 = vadd.f32 %v1507, %v1827
      %v1829 = vpop.f32.mrb[0].mxu0
      %1830 = vmatprep.mubr.f32.mxu0 0.0
      %1831 = vmatmul.mubr.f32.gmra.mrb[0].mxu0 %v1655
      %v1832 = vpop.f32.mrb[0].mxu0
      %v1833 = vadd.f32 %v1512, %v1832
      %v1834 = vpop.f32.mrb[0].mxu0
      %1835 = vmatprep.mubr.f32.mxu0 0.0
      %1836 = vmatmul.mubr.f32.gmra.mrb[0].mxu0 %v1658
      %v1837 = vpop.f32.mrb[0].mxu0
      %v1838 = vadd.f32 %v1517, %v1837
      %v1839 = vpop.f32.mrb[0].mxu0
      %1840 = vmatprep.mubr.f32.mxu0 0.0
      %1841 = vmatmul.mubr.f32.gmra.mrb[0].mxu0 %v1661
      %v1842 = vpop.f32.mrb[0].mxu0
      %v1843 = vadd.f32 %v1522, %v1842
      %v1844 = vpop.f32.mrb[0].mxu0
      %1845 = vmatprep.mubr.f32.mxu0 0.0
      %1846 = vmatmul.mubr.f32.gmra.mrb[0].mxu0 %v1664
      %v1847 = vpop.f32.mrb[0].mxu0
      %v1848 = vadd.f32 %v1527, %v1847
      %v1849 = vpop.f32.mrb[0].mxu0
      %1850 = vmatprep.mubr.f32.mxu0 0.0
      %1851 = vmatmul.mubr.f32.gmra.mrb[0].mxu0 %v1667
      %v1852 = vpop.f32.mrb[0].mxu0
      %v1853 = vadd.f32 %v1532, %v1852
      %v1854 = vpop.f32.mrb[0].mxu0
      %1855 = vmatprep.mubr.f32.mxu0 0.0
      %1856 = vmatmul.mubr.f32.gmra.mrb[0].mxu0 %v1670
      %v1857 = vpop.f32.mrb[0].mxu0
      %v1858 = vadd.f32 %v1537, %v1857
      %v1859 = vpop.f32.mrb[0].mxu0
      %1860 = vmatprep.mubr.f32.mxu0 0.0
      %1861 = vmatmul.mubr.f32.gmra.mrb[0].mxu0 %v1673
      %v1862 = vpop.f32.mrb[0].mxu0
      %v1863 = vadd.f32 %v1542, %v1862
      %v1864 = vpop.f32.mrb[0].mxu0
      %1865 = vmatprep.mubr.f32.mxu0 0.0
      %1866 = vmatmul.mubr.f32.gmra.mrb[0].mxu0 %v1676
      %v1867 = vpop.f32.mrb[0].mxu0
      %v1868 = vadd.f32 %v1547, %v1867
      %v1869 = vpop.f32.mrb[0].mxu0
      %1870 = vmatprep.mubr.f32.mxu0 0.0
      %1871 = vmatmul.mubr.f32.gmra.mrb[0].mxu0 %v1679
      %v1872 = vpop.f32.mrb[0].mxu0
      %v1873 = vadd.f32 %v1552, %v1872
      %v1874 = vpop.f32.mrb[0].mxu0
      %1875 = vmatprep.mubr.f32.mxu0 0.0
      %1876 = vmatmul.mubr.f32.gmra.mrb[0].mxu0 %v1682
      %v1877 = vpop.f32.mrb[0].mxu0
      %v1878 = vadd.f32 %v1557, %v1877
      %v1879 = vpop.f32.mrb[0].mxu0
      %1880 = vmatprep.mubr.f32.mxu0 0.0
      %1881 = vmatmul.mubr.f32.gmra.mrb[0].mxu0 %v1685
      %v1882 = vpop.f32.mrb[0].mxu0
      %v1883 = vadd.f32 %v1562, %v1882
      %v1884 = vpop.f32.mrb[0].mxu0
      %1885 = vmatprep.mubr.f32.mxu0 0.0
      %1886 = vmatmul.mubr.f32.gmra.mrb[0].mxu0 %v1688
      %v1887 = vpop.f32.mrb[0].mxu0
      %v1888 = vadd.f32 %v1567, %v1887
      %v1889 = vpop.f32.mrb[0].mxu0
      %1890 = vmatprep.mubr.f32.mxu0 0.0
      %1891 = vmatmul.mubr.f32.gmra.mrb[0].mxu0 %v1691
      %v1892 = vpop.f32.mrb[0].mxu0
      %v1893 = vadd.f32 %v1572, %v1892
      %v1894 = vpop.f32.mrb[0].mxu0
      %1895 = vmatprep.mubr.f32.mxu0 0.0
      %1896 = vmatmul.mubr.f32.gmra.mrb[0].mxu0 %v1694
      %v1897 = vpop.f32.mrb[0].mxu0
      %v1898 = vadd.f32 %v1577, %v1897
      %v1899 = vpop.f32.mrb[0].mxu0
      %1900 = vmatprep.mubr.f32.mxu0 0.0
      %1901 = vmatmul.mubr.f32.gmra.mrb[0].mxu0 %v1697
      %v1902 = vpop.f32.mrb[0].mxu0
      %v1903 = vadd.f32 %v1582, %v1902
      %v1904 = vpop.f32.mrb[0].mxu0
      %1905 = vmatprep.mubr.f32.mxu0 0.0
      %1906 = vmatmul.mubr.f32.gmra.mrb[0].mxu0 %v1700
      %v1907 = vpop.f32.mrb[0].mxu0
      %v1908 = vadd.f32 %v1587, %v1907
      %v1909 = vpop.f32.mrb[0].mxu0
      %1910 = vmatprep.mubr.f32.mxu0 0.0
      %1911 = vmatmul.mubr.f32.gmra.mrb[0].mxu0 %v1703
      %v1912 = vpop.f32.mrb[0].mxu0
      %v1913 = vadd.f32 %v1592, %v1912
      %v1914 = vpop.f32.mrb[0].mxu0
      %1915 = vmatprep.mubr.f32.mxu0 0.0
      %1916 = vmatmul.mubr.f32.gmra.mrb[0].mxu0 %v1706
      %v1917 = vpop.f32.mrb[0].mxu0
      %v1918 = vadd.f32 %v1597, %v1917
      %v1919 = vpop.f32.mrb[0].mxu0
      %1920 = vmatprep.mubr.f32.mxu0 0.0
      %1921 = vmatmul.mubr.f32.gmra.mrb[0].mxu0 %v1709
      %v1922 = vpop.f32.mrb[0].mxu0
      %v1923 = vadd.f32 %v1602, %v1922
      %v1924 = vpop.f32.mrb[0].mxu0
      %1925 = vmatprep.mubr.f32.mxu0 0.0
      %1926 = vmatmul.mubr.f32.gmra.mrb[0].mxu0 %v1712
      %v1927 = vpop.f32.mrb[0].mxu0
      %v1928 = vadd.f32 %v1607, %v1927
      %v1929 = vpop.f32.mrb[0].mxu0
      %1930 = vmatprep.mubr.f32.mxu0 0.0
      %1931 = vmatmul.mubr.f32.gmra.mrb[0].mxu0 %v1715
      %v1932 = vpop.f32.mrb[0].mxu0
      %v1933 = vadd.f32 %v1612, %v1932
      %v1934 = vpop.f32.mrb[0].mxu0
      %1935 = vmatprep.mubr.f32.mxu0 0.0
      %1936 = vmatmul.mubr.f32.gmra.mrb[0].mxu0 %v1718
      %v1937 = vpop.f32.mrb[0].mxu0
      %v1938 = vadd.f32 %v1617, %v1937
      %v1939 = vpop.f32.mrb[0].mxu0
      %1940 = vmatprep.mubr.f32.mxu0 0.0
      %1941 = vmatmul.mubr.f32.gmra.mrb[0].mxu0 %v1721
      %v1942 = vpop.f32.mrb[0].mxu0
      %v1943 = vadd.f32 %v1622, %v1942
      %v1944 = vpop.f32.mrb[0].mxu0
      %1945 = vmatprep.mubr.f32.mxu0 0.0
      %1946 = vmatmul.mubr.f32.gmra.mrb[0].mxu0 %v1724
      %v1947 = vpop.f32.mrb[0].mxu0
      %v1948 = vadd.f32 %v1627, %v1947
      %v1949 = vpop.f32.mrb[0].mxu0
      %1950 = vdwg.mxu0
      %v1951 = vld [vmem:[%s9] sm:$0x1]
      %v1953 = vlaneseq
      %v1954 = vshrl.u32 %v1953, 7
      %v1955 = vsub.s32 0, %v1954
      %v1956 = vrot.slane %v1951, %v1955
      %v1958 = vadd.f32 %v1793, %v1956
      %v1959 = vadd.f32 %v1798, %v1956
      %v1960 = vadd.f32 %v1803, %v1956
      %v1961 = vadd.f32 %v1808, %v1956
      %v1962 = vadd.f32 %v1813, %v1956
      %v1963 = vadd.f32 %v1818, %v1956
      %v1964 = vadd.f32 %v1823, %v1956
      %v1965 = vadd.f32 %v1828, %v1956
      %v1966 = vadd.f32 %v1833, %v1956
      %v1967 = vadd.f32 %v1838, %v1956
      %v1968 = vadd.f32 %v1843, %v1956
      %v1969 = vadd.f32 %v1848, %v1956
      %v1970 = vadd.f32 %v1853, %v1956
      %v1971 = vadd.f32 %v1858, %v1956
      %v1972 = vadd.f32 %v1863, %v1956
      %v1973 = vadd.f32 %v1868, %v1956
      %v1974 = vadd.f32 %v1873, %v1956
      %v1975 = vadd.f32 %v1878, %v1956
      %v1976 = vadd.f32 %v1883, %v1956
      %v1977 = vadd.f32 %v1888, %v1956
      %v1978 = vadd.f32 %v1893, %v1956
      %v1979 = vadd.f32 %v1898, %v1956
      %v1980 = vadd.f32 %v1903, %v1956
      %v1981 = vadd.f32 %v1908, %v1956
      %v1982 = vadd.f32 %v1913, %v1956
      %v1983 = vadd.f32 %v1918, %v1956
      %v1984 = vadd.f32 %v1923, %v1956
      %v1985 = vadd.f32 %v1928, %v1956
      %v1986 = vadd.f32 %v1933, %v1956
      %v1987 = vadd.f32 %v1938, %v1956
      %v1988 = vadd.f32 %v1943, %v1956
      %v1989 = vadd.f32 %v1948, %v1956
      %v1990 = vmax.f32 %v1958, 0.0
      %v1991 = vmax.f32 %v1959, 0.0
      %v1992 = vmax.f32 %v1960, 0.0
      %v1993 = vmax.f32 %v1961, 0.0
      %v1994 = vmax.f32 %v1962, 0.0
      %v1995 = vmax.f32 %v1963, 0.0
      %v1996 = vmax.f32 %v1964, 0.0
      %v1997 = vmax.f32 %v1965, 0.0
      %v1998 = vmax.f32 %v1966, 0.0
      %v1999 = vmax.f32 %v1967, 0.0
      %v2000 = vmax.f32 %v1968, 0.0
      %v2001 = vmax.f32 %v1969, 0.0
      %v2002 = vmax.f32 %v1970, 0.0
      %v2003 = vmax.f32 %v1971, 0.0
      %v2004 = vmax.f32 %v1972, 0.0
      %v2005 = vmax.f32 %v1973, 0.0
      %v2006 = vmax.f32 %v1974, 0.0
      %v2007 = vmax.f32 %v1975, 0.0
      %v2008 = vmax.f32 %v1976, 0.0
      %v2009 = vmax.f32 %v1977, 0.0
      %v2010 = vmax.f32 %v1978, 0.0
      %v2011 = vmax.f32 %v1979, 0.0
      %v2012 = vmax.f32 %v1980, 0.0
      %v2013 = vmax.f32 %v1981, 0.0
      %v2014 = vmax.f32 %v1982, 0.0
      %v2015 = vmax.f32 %v1983, 0.0
      %v2016 = vmax.f32 %v1984, 0.0
      %v2017 = vmax.f32 %v1985, 0.0
      %v2018 = vmax.f32 %v1986, 0.0
      %v2019 = vmax.f32 %v1987, 0.0
      %v2020 = vmax.f32 %v1988, 0.0
      %v2021 = vmax.f32 %v1989, 0.0
      %v2022 = vsel %vm1308, %v1990, 0.0
      %v2023 = vsel %vm1308, %v1991, 0.0
      %v2024 = vadd.f32 %v2022, %v2023
      %v2025 = vsel %vm1308, %v1992, 0.0
      %v2026 = vadd.f32 %v2024, %v2025
      %v2027 = vsel %vm1308, %v1993, 0.0
      %v2028 = vadd.f32 %v2026, %v2027
      %v2029 = vsel %vm1308, %v1994, 0.0
      %v2030 = vadd.f32 %v2028, %v2029
      %v2031 = vsel %vm1308, %v1995, 0.0
      %v2032 = vadd.f32 %v2030, %v2031
      %v2033 = vsel %vm1308, %v1996, 0.0
      %v2034 = vadd.f32 %v2032, %v2033
      %v2035 = vsel %vm1308, %v1997, 0.0
      %v2036 = vadd.f32 %v2034, %v2035
      %v2037 = vsel %vm1308, %v1998, 0.0
      %v2038 = vadd.f32 %v2036, %v2037
      %v2039 = vsel %vm1308, %v1999, 0.0
      %v2040 = vadd.f32 %v2038, %v2039
      %v2041 = vsel %vm1308, %v2000, 0.0
      %v2042 = vadd.f32 %v2040, %v2041
      %v2043 = vsel %vm1308, %v2001, 0.0
      %v2044 = vadd.f32 %v2042, %v2043
      %v2045 = vsel %vm1308, %v2002, 0.0
      %v2046 = vadd.f32 %v2044, %v2045
      %v2047 = vsel %vm1308, %v2003, 0.0
      %v2048 = vadd.f32 %v2046, %v2047
      %v2049 = vsel %vm1308, %v2004, 0.0
      %v2050 = vadd.f32 %v2048, %v2049
      %v2051 = vsel %vm1308, %v2005, 0.0
      %v2052 = vadd.f32 %v2050, %v2051
      %v2053 = vsel %vm1308, %v2006, 0.0
      %v2054 = vadd.f32 %v2052, %v2053
      %v2055 = vsel %vm1308, %v2007, 0.0
      %v2056 = vadd.f32 %v2054, %v2055
      %v2057 = vsel %vm1308, %v2008, 0.0
      %v2058 = vadd.f32 %v2056, %v2057
      %v2059 = vsel %vm1308, %v2009, 0.0
      %v2060 = vadd.f32 %v2058, %v2059
      %v2061 = vsel %vm1308, %v2010, 0.0
      %v2062 = vadd.f32 %v2060, %v2061
      %v2063 = vsel %vm1308, %v2011, 0.0
      %v2064 = vadd.f32 %v2062, %v2063
      %v2065 = vsel %vm1308, %v2012, 0.0
      %v2066 = vadd.f32 %v2064, %v2065
      %v2067 = vsel %vm1308, %v2013, 0.0
      %v2068 = vadd.f32 %v2066, %v2067
      %v2069 = vsel %vm1308, %v2014, 0.0
      %v2070 = vadd.f32 %v2068, %v2069
      %v2071 = vsel %vm1308, %v2015, 0.0
      %v2072 = vadd.f32 %v2070, %v2071
      %v2073 = vsel %vm1308, %v2016, 0.0
      %v2074 = vadd.f32 %v2072, %v2073
      %v2075 = vsel %vm1308, %v2017, 0.0
      %v2076 = vadd.f32 %v2074, %v2075
      %v2077 = vsel %vm1308, %v2018, 0.0
      %v2078 = vadd.f32 %v2076, %v2077
      %v2079 = vsel %vm1308, %v2019, 0.0
      %v2080 = vadd.f32 %v2078, %v2079
      %v2081 = vsel %vm1308, %v2020, 0.0
      %v2082 = vadd.f32 %v2080, %v2081
      %v2083 = vsel %vm1308, %v2021, 0.0
      %v2084 = vadd.f32 %v2082, %v2083
      %v2085 = vrot.slane %v2084, 4
      %v2086 = vadd.f32 %v2084, %v2085
      %v2087 = vrot.slane %v2086, 2
      %v2088 = vadd.f32 %v2086, %v2087
      %v2089 = vrot.slane %v2088, 1
      %v2090 = vadd.f32 %v2088, %v2089
      %v2091 = vmul.f32 %v2090, 0.00390625
      %v2092 = vld [vmem:[%s10] sm:$0xff]
      %v2093 = vld [vmem:[%s10 + $0x8] sm:$0xff]
      %v2094 = vld [vmem:[%s10 + $0x10] sm:$0xff]
      %v2095 = vld [vmem:[%s10 + $0x18] sm:$0xff]
      %v2096 = vld [vmem:[%s11] sm:$0x1]
      %v2098 = vsel %vm1308, %v2091, 0
      %2100 = vmatprep.subr.mxu0 0.0
      %2101 = vmatpush1.msra.mxu0 %v2092
      %2102 = vmatprep.subr.mxu0 0.0
      %2103 = vmatpush1.msra.mxu0 %v2093
      %2104 = vmatprep.subr.mxu0 0.0
      %2105 = vmatpush1.msra.mxu0 %v2094
      %2106 = vmatprep.subr.mxu0 0.0
      %2107 = vmatpush1.msra.mxu0 %v2095
      %2108 = vmatprep.subr.mxu0 0.0
      %2109 = vmatpush1.msra.mxu0 0.0
      %2110 = vmatprep.subr.mxu0 0.0
      %2111 = vmatpush1.msra.mxu0 0.0
      %2112 = vmatprep.subr.mxu0 0.0
      %2113 = vmatpush1.msra.mxu0 0.0
      %2114 = vmatprep.subr.mxu0 0.0
      %2115 = vmatpush1.msra.mxu0 0.0
      %2116 = vmatprep.subr.mxu0 0.0
      %2117 = vmatpush1.msra.mxu0 0.0
      %2118 = vmatprep.subr.mxu0 0.0
      %2119 = vmatpush1.msra.mxu0 0.0
      %2120 = vmatprep.subr.mxu0 0.0
      %2121 = vmatpush1.msra.mxu0 0.0
      %2122 = vmatprep.subr.mxu0 0.0
      %2123 = vmatpush1.msra.mxu0 0.0
      %2124 = vmatprep.subr.mxu0 0.0
      %2125 = vmatpush1.msra.mxu0 0.0
      %2126 = vmatprep.subr.mxu0 0.0
      %2127 = vmatpush1.msra.mxu0 0.0
      %2128 = vmatprep.subr.mxu0 0.0
      %2129 = vmatpush1.msra.mxu0 0.0
      %2130 = vmatprep.subr.mxu0 0.0
      %2131 = vmatpush1.msra.mxu0 0.0
      %2132 = vmatprep.subr.mxu0 0.0
      %2133 = vmatpush1.msra.mxu0 0.0
      %2134 = vmatprep.subr.mxu0 0.0
      %2135 = vmatpush1.msra.mxu0 0.0
      %2136 = vmatprep.subr.mxu0 0.0
      %2137 = vmatpush1.msra.mxu0 0.0
      %2138 = vmatprep.subr.mxu0 0.0
      %2139 = vmatpush1.msra.mxu0 0.0
      %2140 = vmatprep.subr.mxu0 0.0
      %2141 = vmatpush1.msra.mxu0 0.0
      %2142 = vmatprep.subr.mxu0 0.0
      %2143 = vmatpush1.msra.mxu0 0.0
      %2144 = vmatprep.subr.mxu0 0.0
      %2145 = vmatpush1.msra.mxu0 0.0
      %2146 = vmatprep.subr.mxu0 0.0
      %2147 = vmatpush1.msra.mxu0 0.0
      %2148 = vmatprep.subr.mxu0 0.0
      %2149 = vmatpush1.msra.mxu0 0.0
      %2150 = vmatprep.subr.mxu0 0.0
      %2151 = vmatpush1.msra.mxu0 0.0
      %2152 = vmatprep.subr.mxu0 0.0
      %2153 = vmatpush1.msra.mxu0 0.0
      %2154 = vmatprep.subr.mxu0 0.0
      %2155 = vmatpush1.msra.mxu0 0.0
      %2156 = vmatprep.subr.mxu0 0.0
      %2157 = vmatpush1.msra.mxu0 0.0
      %2158 = vmatprep.subr.mxu0 0.0
      %2159 = vmatpush1.msra.mxu0 0.0
      %2160 = vmatprep.subr.mxu0 0.0
      %2161 = vmatpush1.msra.mxu0 0.0
      %2162 = vmatprep.subr.mxu0 0.0
      %2163 = vmatpush1.msra.mxu0 0.0
      %2164 = vmatprep.mubr.f32.mxu0 0.0
      %2165 = vmatmul.mubr.f32.gmra.mrb[0].mxu0 %v2098
      %v2166 = vpop.f32.mrb[0].mxu0
      %v2167 = vadd.f32 %v2096, %v2166
      %v2168 = vpop.f32.mrb[0].mxu0
      %2169 = vdwg.mxu0
      %v2170 = vxor.u32 %v2167, 2147483648
      %v2171 = vmul.f32 %v2170, 1.442695
      %v2172 = vpow.pop %v2171
      %v2173 = vadd.f32 %v2172, 1.0
      %v2174 = vrcp.pop %v2173
      %v2175 = vmul.f32 1.0, %v2174
      %v2176 = vsub.f32 %v812, %v1142
      %v2177 = vsub.f32 %v817, %v1147
      %v2178 = vsub.f32 %v822, %v1152
      %v2179 = vsub.f32 %v827, %v1157
      %v2180 = vsub.f32 %v832, %v1162
      %v2181 = vsub.f32 %v837, %v1167
      %v2182 = vsub.f32 %v842, %v1172
      %v2183 = vsub.f32 %v847, %v1177
      %v2184 = vsub.f32 %v852, %v1182
      %v2185 = vsub.f32 %v857, %v1187
      %v2186 = vsub.f32 %v862, %v1192
      %v2187 = vsub.f32 %v867, %v1197
      %v2188 = vsub.f32 %v872, %v1202
      %v2189 = vsub.f32 %v877, %v1207
      %v2190 = vsub.f32 %v882, %v1212
      %v2191 = vsub.f32 %v887, %v1217
      %v2192 = vsub.f32 %v892, %v1222
      %v2193 = vsub.f32 %v897, %v1227
      %v2194 = vsub.f32 %v902, %v1232
      %v2195 = vsub.f32 %v907, %v1237
      %v2196 = vsub.f32 %v912, %v1242
      %v2197 = vsub.f32 %v917, %v1247
      %v2198 = vsub.f32 %v922, %v1252
      %v2199 = vsub.f32 %v927, %v1257
      %v2200 = vsub.f32 %v932, %v1262
      %v2201 = vsub.f32 %v937, %v1267
      %v2202 = vsub.f32 %v942, %v1272
      %v2203 = vsub.f32 %v947, %v1277
      %v2204 = vsub.f32 %v952, %v1282
      %v2205 = vsub.f32 %v957, %v1287
      %v2206 = vsub.f32 %v962, %v1292
      %v2207 = vsub.f32 %v967, %v1297
      %v2208 = vlaneseq
      %v2209 = vshrl.u32 %v2208, 7
      %v2210 = vsub.s32 0, %v2209
      %v2211 = vrot.slane %v2175, %v2210
      %v2212 = vmul.f32 %v2211, %v2176
      %v2213 = vmul.f32 %v2211, %v2177
      %v2214 = vmul.f32 %v2211, %v2178
      %v2215 = vmul.f32 %v2211, %v2179
      %v2216 = vmul.f32 %v2211, %v2180
      %v2217 = vmul.f32 %v2211, %v2181
      %v2218 = vmul.f32 %v2211, %v2182
      %v2219 = vmul.f32 %v2211, %v2183
      %v2220 = vmul.f32 %v2211, %v2184
      %v2221 = vmul.f32 %v2211, %v2185
      %v2222 = vmul.f32 %v2211, %v2186
      %v2223 = vmul.f32 %v2211, %v2187
      %v2224 = vmul.f32 %v2211, %v2188
      %v2225 = vmul.f32 %v2211, %v2189
      %v2226 = vmul.f32 %v2211, %v2190
      %v2227 = vmul.f32 %v2211, %v2191
      %v2228 = vmul.f32 %v2211, %v2192
      %v2229 = vmul.f32 %v2211, %v2193
      %v2230 = vmul.f32 %v2211, %v2194
      %v2231 = vmul.f32 %v2211, %v2195
      %v2232 = vmul.f32 %v2211, %v2196
      %v2233 = vmul.f32 %v2211, %v2197
      %v2234 = vmul.f32 %v2211, %v2198
      %v2235 = vmul.f32 %v2211, %v2199
      %v2236 = vmul.f32 %v2211, %v2200
      %v2237 = vmul.f32 %v2211, %v2201
      %v2238 = vmul.f32 %v2211, %v2202
      %v2239 = vmul.f32 %v2211, %v2203
      %v2240 = vmul.f32 %v2211, %v2204
      %v2241 = vmul.f32 %v2211, %v2205
      %v2242 = vmul.f32 %v2211, %v2206
      %v2243 = vmul.f32 %v2211, %v2207
      %v2244 = vadd.f32 %v1142, %v2212
      %v2245 = vadd.f32 %v1147, %v2213
      %v2246 = vadd.f32 %v1152, %v2214
      %v2247 = vadd.f32 %v1157, %v2215
      %v2248 = vadd.f32 %v1162, %v2216
      %v2249 = vadd.f32 %v1167, %v2217
      %v2250 = vadd.f32 %v1172, %v2218
      %v2251 = vadd.f32 %v1177, %v2219
      %v2252 = vadd.f32 %v1182, %v2220
      %v2253 = vadd.f32 %v1187, %v2221
      %v2254 = vadd.f32 %v1192, %v2222
      %v2255 = vadd.f32 %v1197, %v2223
      %v2256 = vadd.f32 %v1202, %v2224
      %v2257 = vadd.f32 %v1207, %v2225
      %v2258 = vadd.f32 %v1212, %v2226
      %v2259 = vadd.f32 %v1217, %v2227
      %v2260 = vadd.f32 %v1222, %v2228
      %v2261 = vadd.f32 %v1227, %v2229
      %v2262 = vadd.f32 %v1232, %v2230
      %v2263 = vadd.f32 %v1237, %v2231
      %v2264 = vadd.f32 %v1242, %v2232
      %v2265 = vadd.f32 %v1247, %v2233
      %v2266 = vadd.f32 %v1252, %v2234
      %v2267 = vadd.f32 %v1257, %v2235
      %v2268 = vadd.f32 %v1262, %v2236
      %v2269 = vadd.f32 %v1267, %v2237
      %v2270 = vadd.f32 %v1272, %v2238
      %v2271 = vadd.f32 %v1277, %v2239
      %v2272 = vadd.f32 %v1282, %v2240
      %v2273 = vadd.f32 %v1287, %v2241
      %v2274 = vadd.f32 %v1292, %v2242
      %v2275 = vadd.f32 %v1297, %v2243
      %2276 = vst.msk [vmem:[%s433] sm:$0xff] %vm1308, %v2244
      %2277 = vst.msk [vmem:[%s433 + $0x8] sm:$0xff] %vm1308, %v2245
      %2278 = vst.msk [vmem:[%s433 + $0x10] sm:$0xff] %vm1308, %v2246
      %2279 = vst.msk [vmem:[%s433 + $0x18] sm:$0xff] %vm1308, %v2247
      %2280 = vst.msk [vmem:[%s433 + $0x20] sm:$0xff] %vm1308, %v2248
      %2281 = vst.msk [vmem:[%s433 + $0x28] sm:$0xff] %vm1308, %v2249
      %2282 = vst.msk [vmem:[%s433 + $0x30] sm:$0xff] %vm1308, %v2250
      %2283 = vst.msk [vmem:[%s433 + $0x38] sm:$0xff] %vm1308, %v2251
      %2284 = vst.msk [vmem:[%s433 + $0x40] sm:$0xff] %vm1308, %v2252
      %2285 = vst.msk [vmem:[%s433 + $0x48] sm:$0xff] %vm1308, %v2253
      %2286 = vst.msk [vmem:[%s433 + $0x50] sm:$0xff] %vm1308, %v2254
      %2287 = vst.msk [vmem:[%s433 + $0x58] sm:$0xff] %vm1308, %v2255
      %2288 = vst.msk [vmem:[%s433 + $0x60] sm:$0xff] %vm1308, %v2256
      %2289 = vst.msk [vmem:[%s433 + $0x68] sm:$0xff] %vm1308, %v2257
      %2290 = vst.msk [vmem:[%s433 + $0x70] sm:$0xff] %vm1308, %v2258
      %2291 = vst.msk [vmem:[%s433 + $0x78] sm:$0xff] %vm1308, %v2259
      %2292 = vst.msk [vmem:[%s433 + $0x80] sm:$0xff] %vm1308, %v2260
      %2293 = vst.msk [vmem:[%s433 + $0x88] sm:$0xff] %vm1308, %v2261
      %2294 = vst.msk [vmem:[%s433 + $0x90] sm:$0xff] %vm1308, %v2262
      %2295 = vst.msk [vmem:[%s433 + $0x98] sm:$0xff] %vm1308, %v2263
      %2296 = vst.msk [vmem:[%s433 + $0xa0] sm:$0xff] %vm1308, %v2264
      %2297 = vst.msk [vmem:[%s433 + $0xa8] sm:$0xff] %vm1308, %v2265
      %2298 = vst.msk [vmem:[%s433 + $0xb0] sm:$0xff] %vm1308, %v2266
      %2299 = vst.msk [vmem:[%s433 + $0xb8] sm:$0xff] %vm1308, %v2267
      %2300 = vst.msk [vmem:[%s433 + $0xc0] sm:$0xff] %vm1308, %v2268
      %2301 = vst.msk [vmem:[%s433 + $0xc8] sm:$0xff] %vm1308, %v2269
      %2302 = vst.msk [vmem:[%s433 + $0xd0] sm:$0xff] %vm1308, %v2270
      %2303 = vst.msk [vmem:[%s433 + $0xd8] sm:$0xff] %vm1308, %v2271
      %2304 = vst.msk [vmem:[%s433 + $0xe0] sm:$0xff] %vm1308, %v2272
      %2305 = vst.msk [vmem:[%s433 + $0xe8] sm:$0xff] %vm1308, %v2273
      %2306 = vst.msk [vmem:[%s433 + $0xf0] sm:$0xff] %vm1308, %v2274
      %2307 = vst.msk [vmem:[%s433 + $0xf8] sm:$0xff] %vm1308, %v2275
      %p2308 = scmp.lt.s32.totalorder %s23, 1
      %s2309 = scalar_select %p2308, %s23, 1
      %s2310 = smul.addr %s2309, 32
      %s2311 = smul.addr %s2310, 8
      %s2312 = scalar_lea.vmem %s12, %s2311
      // Predicated region
      $region69: #{tpu_custom_call.1} parent=67 // pred_check
        %p2313 = pneg %p303
      $region70: #{tpu_custom_call.1} parent=67 // pred_check_branch
        %2315 = sbr.rel (%p2313) target = $region72
      $region71: #{tpu_custom_call.1} parent=67 // pred_region
        _
      $region72: #{tpu_custom_call.1} parent=67 // pred_fallthru
        _
    $region68: #{tpu_custom_call.1} parent=5 // pred_fallthru
      _
    %p2316 = scmp.le.s32.totalorder 2, %s18
    // Predicated region
    $region73: #{tpu_custom_call.1} parent=5 // pred_check
      %p2317 = pneg %p2316
    $region74: #{tpu_custom_call.1} parent=5 // pred_check_branch
      %2319 = sbr.rel (%p2317) target = $region76
    $region75: #{tpu_custom_call.1} parent=5 // pred_region
      %s2320 = ssub.s32 %s18, 2
      // Predicated region
      $region77: #{tpu_custom_call.1} parent=75 // pred_check
        %p2321 = pneg %p309
      $region78: #{tpu_custom_call.1} parent=75 // pred_check_branch
        %2323 = sbr.rel (%p2321) target = $region80
      $region79: #{tpu_custom_call.1} parent=75 // pred_region
        %p2324 = scmp.lt.s32.totalorder %s24, 1
        %s2325 = scalar_select %p2324, %s24, 1
        %s2326 = smul.addr %s2325, 32
        %s2327 = smul.addr %s2326, 8
        %s2328 = scalar_lea.vmem %s12, %s2327
      $region80: #{tpu_custom_call.1} parent=75 // pred_fallthru
        _
    $region76: #{tpu_custom_call.1} parent=5 // pred_fallthru
      _
  $region6: #{tpu_custom_call.1} parent=0 // loop_footer
    %s22 = sadd.s32 1, %s18
  $region7: #{tpu_custom_call.1} parent=0 // loop_footer_branch
    %17 = sbr.rel target = $region3
  $region8: #{tpu_custom_call.1} parent=0 // loop_exit
    _

</llo_original>
